<compile_context>
chip_gen: v6e
topology: v6e:2x2x1
jax: 0.10.0
libtpu: 0.0.40
codegen_flags: <defaults>
</compile_context>

<pallas_src>
import jax
import jax.numpy as jnp
from jax import lax
from jax.experimental import pallas as pl
from jax.experimental.pallas import tpu as pltpu


def _round_up(v, m):
    return (v + m - 1) // m * m


def _vmem_limit_bytes():
    """Per-generation scoped-VMEM limit (a fixed 32 MiB only suits v7x)."""
    try:
        cap = int(pltpu.get_tpu_info().vmem_capacity_bytes)
    except Exception:
        cap = 64 * 1024 * 1024          # conservative fallback: v7x physical
    return int(min(cap * 3 // 4, 100 * 1024 * 1024))


def adafm_conv(x_nchw, W_oihw, b, style_gama, style_beta, b_adafm,
               compute_dtype=jnp.bfloat16, l_tile=None, cout_tile=None):
    """AdaFM_multiTask.forward(input, W, b) with task_id=-1, UPDATE_GLOBAL=False."""
    N, Cin, H, Wd = x_nchw.shape
    Cout = W_oihw.shape[0]
    out_dtype = x_nchw.dtype

    SW = Wd + 2                       # padded row stride
    L = H * SW                        # flattened output length per image

    # ---- tiling choices ------------------------------------------------------
    # Cin: sublane-align the per-tap K dim (16 for bf16 packing, 8 for f32).
    c_mult = 8 if jnp.dtype(compute_dtype).itemsize == 4 else 16
    Cin_p = _round_up(Cin, c_mult)

    # Cout: tile to <=256 rows (v6e/v7x MXU height; 128 would also suit v5e).
    Cout_p = _round_up(Cout, 8)
    if cout_tile is None:
        cout_tile = Cout_p if Cout_p <= 256 else 256
    cout_tile = _round_up(max(cout_tile, 8), 8)
    if cout_tile >= Cout_p:
        cout_tile = Cout_p
    Cout_p = _round_up(Cout_p, cout_tile)
    n_co = Cout_p // cout_tile

    # L (flattened spatial = lane dim): single tile for small maps, else a
    # 128-multiple tile (512 default) so output stores stay lane-dense.
    if l_tile is None:
        l_tile = L if L <= 2048 else 512
    if l_tile >= L:
        l_tile, L_pad = L, L
    else:
        if l_tile % 128 != 0:
            raise ValueError("l_tile must be a multiple of 128 when tiling L")
        L_pad = _round_up(L, l_tile)
    n_lt = L_pad // l_tile

    P = (H + 3) * SW                  # flat padded-image width (+1 guard row)
    P_pad = L_pad + 3 * SW            # extended so the last L tile stays in bounds

    pci = Cin_p - Cin
    pco = Cout_p - Cout

    # ---- wrapper-side layout plumbing only ------------------------------------
    # Activation: cast to compute dtype FIRST (halves HBM traffic, no big
    # in-kernel cast pass), zero-pad (1 top, 2 bottom, 1 left/right), flatten.
    # TODO(synk): for large activations skip this jnp.pad HBM pass by keeping x
    # unpadded in HBM (memory_space=pl.ANY) and DMA-ing rows into a
    # zero-initialised VMEM scratch with the padded row stride.
    x_c = x_nchw.astype(compute_dtype)
    x_p = jnp.pad(x_c, ((0, 0), (0, pci), (1, 2), (1, 1)))       # (N,Cin_p,H+3,SW)
    x_flat = x_p.reshape(N, Cin_p, P)
    if P_pad > P:
        x_flat = jnp.pad(x_flat, ((0, 0), (0, 0), (0, P_pad - P)))

    # Raw conv weight, tap-major / cin-minor: (Cout_p, 9*Cin_p), kept f32 so the
    # AdaFM modulation happens in f32 inside the kernel.
    Wp = jnp.pad(W_oihw.astype(jnp.float32),
                 ((0, pco), (0, pci), (0, 0), (0, 0)))            # (Cout_p,Cin_p,3,3)
    w_flat = jnp.transpose(Wp, (0, 2, 3, 1)).reshape(Cout_p, 9 * Cin_p)

    # AdaFM gamma/beta — NOT tiled x9 (modulation applied per tap in-kernel).
    g2 = jnp.pad(style_gama[:, :, 0, 0].astype(jnp.float32), ((0, pco), (0, pci)))
    bt2 = jnp.pad(style_beta[:, :, 0, 0].astype(jnp.float32), ((0, pco), (0, pci)))

    # Pre-summed bias (b + self.b): one (Cout_p, 1) operand instead of two.
    bias = jnp.pad((b + b_adafm).astype(jnp.float32), (0, pco)).reshape(Cout_p, 1)

    def kernel(x_ref, w_ref, g_ref, bt_ref, bias_ref, o_ref, acc_ref):
        # x_ref   : (Cin_p, P_pad)        whole padded image (one batch element)
        # w_ref   : (cout_tile, 9*Cin_p)  raw conv weight, tap-major
        # g_ref   : (cout_tile, Cin_p)    AdaFM gamma
        # bt_ref  : (cout_tile, Cin_p)    AdaFM beta
        # bias_ref: (cout_tile, 1)        b + self.b
        # o_ref   : (cout_tile, l_tile)   lane-dense channel-major output tile
        # acc_ref : (cout_tile, l_tile)   f32 accumulator scratch
        lt = pl.program_id(2)
        l0 = lt * l_tile
        if l_tile % 128 == 0:
            l0 = pl.multiple_of(l0, 128)

        g = g_ref[...]
        bt = bt_ref[...]
        acc_ref[...] = jnp.zeros_like(acc_ref)

        # 9-tap accumulate: each tap is one MXU matmul over a contiguous lane
        # window of the flat image; only one (Cin_p, l_tile) tap slice is live
        # at a time (no 9x im2col buffer).  Per-tap AdaFM modulation is a tiny
        # (cout_tile x Cin_p) VPU pass (~1/(2*l_tile) of the tap's MXU FLOPs)
        # and hides under the matmul slot.
        for dy in range(3):
            for dx in range(3):
                t = dy * 3 + dx
                s = dy * SW + dx
                w_t = (w_ref[:, t * Cin_p:(t + 1) * Cin_p] * g + bt
                       ).astype(compute_dtype)
                if n_lt == 1:
                    x_t = x_ref[:, s:s + l_tile]             # static lane slice
                else:
                    x_t = x_ref[:, pl.ds(l0 + s, l_tile)]    # dynamic lane window
                acc_ref[...] += jnp.dot(w_t, x_t,
                                        preferred_element_type=jnp.float32)

        o_ref[...] = (acc_ref[...] + bias_ref[...]).astype(o_ref.dtype)

    out_flat = pl.pallas_call(
        kernel,
        out_shape=jax.ShapeDtypeStruct((N, Cout_p, L_pad), out_dtype),
        grid_spec=pltpu.PrefetchScalarGridSpec(
            num_scalar_prefetch=0,
            # lt innermost: x block (per batch) and weight block (per Cout
            # tile) keep the same block index across inner steps -> no re-DMA.
            grid=(N, n_co, n_lt),
            in_specs=[
                pl.BlockSpec((None, Cin_p, P_pad), lambda n, co, lt: (n, 0, 0)),
                pl.BlockSpec((cout_tile, 9 * Cin_p), lambda n, co, lt: (co, 0)),
                pl.BlockSpec((cout_tile, Cin_p), lambda n, co, lt: (co, 0)),
                pl.BlockSpec((cout_tile, Cin_p), lambda n, co, lt: (co, 0)),
                pl.BlockSpec((cout_tile, 1), lambda n, co, lt: (co, 0)),
            ],
            out_specs=pl.BlockSpec((None, cout_tile, l_tile),
                                   lambda n, co, lt: (n, co, lt)),
            scratch_shapes=[pltpu.VMEM((cout_tile, l_tile), jnp.float32)],
        ),
        compiler_params=pltpu.CompilerParams(
            # All three axes independent -> all parallel (v7x megacore gets
            # Cout/L tiles to split even at tiny batch).
            dimension_semantics=("parallel", "parallel", "parallel"),
            vmem_limit_bytes=_vmem_limit_bytes(),
        ),
    )(x_flat, w_flat, g2, bt2, bias)

    # Drop padded Cout rows / L tail, un-flatten, drop the two row-wrap
    # columns.  No transposes on the hot path.
    # TODO(synk): expose the (N, Cout, H, W+2) channel-major slab directly if
    # the consumer can read a stride-(W+2) layout and skip this slice pass.
    return out_flat[:, :Cout, :L].reshape(N, Cout, H, SW)[:, :, :, :Wd]


def _reference(x, Wc, b, gama, beta, b_ad):
    W_mod = Wc * gama + beta
    out = lax.conv_general_dilated(
        x, W_mod, window_strides=(1, 1), padding=((1, 1), (1, 1)),
        dimension_numbers=("NCHW", "OIHW", "NCHW"))
    return out + (b + b_ad)[None, :, None, None]


def _make_inputs(key, N, Cin, Cout, H, W):
    k1, k2, k3, k4, k5, k6 = jax.random.split(key, 6)
    x = jax.random.normal(k1, (N, Cin, H, W), jnp.float32)
    Wc = 0.1 * jax.random.normal(k2, (Cout, Cin, 3, 3), jnp.float32)
    b = 0.1 * jax.random.normal(k3, (Cout,), jnp.float32)
    # Module params from __init__: style_gama=ones, style_beta=zeros,
    # self.b=zeros; perturbed so the modulation path is actually exercised.
    gama = jnp.ones((Cout, Cin, 1, 1), jnp.float32) + \
        0.05 * jax.random.normal(k4, (Cout, Cin, 1, 1), jnp.float32)
    beta = 0.05 * jax.random.normal(k5, (Cout, Cin, 1, 1), jnp.float32)
    b_ad = 0.05 * jax.random.normal(k6, (Cout,), jnp.float32)
    return x, Wc, b, gama, beta, b_ad


if __name__ == "__main__":
    root = jax.random.PRNGKey(0)
    k_a, k_b = jax.random.split(root)

    # Case A: module's small shapes, default bf16 compute, auto single-tile plan.
    x, Wc, b, gama, beta, b_ad = _make_inputs(k_a, 2, 4, 4, 16, 16)
    out = jax.block_until_ready(adafm_conv(x, Wc, b, gama, beta, b_ad))
    ref = _reference(x, Wc, b, gama, beta, b_ad)
    assert out.shape == ref.shape
    assert jnp.allclose(out, ref, atol=5e-2, rtol=5e-2), "bf16 path mismatch"

    # Case B: exercise the Cout-tile / L-tile (dynamic tap window + L padding)
    # path in f32, checked tightly against the conv reference.
    x, Wc, b, gama, beta, b_ad = _make_inputs(k_b, 2, 8, 16, 16, 16)
    out = jax.block_until_ready(
        adafm_conv(x, Wc, b, gama, beta, b_ad,
                   compute_dtype=jnp.float32, l_tile=128, cout_tile=8))
    ref = _reference(x, Wc, b, gama, beta, b_ad)
    assert out.shape == ref.shape
    assert jnp.allclose(out, ref, atol=1e-4, rtol=1e-4), "tiled f32 path mismatch"

    # TODO(synk): UPDATE_GLOBAL=True / task_id>=0 branches only append/select
    # parameter copies from Python lists (host-side state, no tensor compute);
    # the task_id>=0 conv path reuses this same kernel with the selected
    # gamma/beta/b.
    print("KERNEL_OK")
</pallas_src>

<mosaic_0001>
module attributes {stable_mosaic.version = 11 : i64} {
  func.func @kernel(%arg0: i32, %arg1: i32, %arg2: i32, %arg3: memref<1x16x342xbf16, #tpu.memory_space<vmem>>, %arg4: memref<8x144xf32, #tpu.memory_space<vmem>>, %arg5: memref<8x16xf32, #tpu.memory_space<vmem>>, %arg6: memref<8x16xf32, #tpu.memory_space<vmem>>, %arg7: memref<8x1xf32, #tpu.memory_space<vmem>>, %arg8: memref<1x8x288xf32, #tpu.memory_space<vmem>>, %arg9: memref<8x288xf32, #tpu.memory_space<vmem>>) attributes {dimension_semantics = [#tpu.dimension_semantics<parallel>, #tpu.dimension_semantics<parallel>, #tpu.dimension_semantics<parallel>], iteration_bounds = array<i64: 2, 1, 1>, scalar_prefetch = 0 : i64, scratch_operands = 1 : i64, tpu.core_type = #tpu.core_type<tc>, window_params = [{transform_indices = @transform_0, window_bounds = array<i64: 1, 16, 342>}, {transform_indices = @transform_1, window_bounds = array<i64: 8, 144>}, {transform_indices = @transform_2, window_bounds = array<i64: 8, 16>}, {transform_indices = @transform_3, window_bounds = array<i64: 8, 16>}, {transform_indices = @transform_4, window_bounds = array<i64: 8, 1>}, {transform_indices = @transform_5, window_bounds = array<i64: 1, 8, 288>}]} {
    %c0 = arith.constant 0 : index
    %c0_0 = arith.constant 0 : index
    %0 = vector.load %arg5[%c0, %c0_0] : memref<8x16xf32, #tpu.memory_space<vmem>>, vector<8x16xf32>
    %c0_1 = arith.constant 0 : index
    %c0_2 = arith.constant 0 : index
    %1 = vector.load %arg6[%c0_1, %c0_2] : memref<8x16xf32, #tpu.memory_space<vmem>>, vector<8x16xf32>
    %cst = arith.constant 0.000000e+00 : f32
    %2 = vector.broadcast %cst : f32 to vector<8x288xf32>
    %c0_3 = arith.constant 0 : index
    %c0_4 = arith.constant 0 : index
    %3 = vector.load %arg9[%c0_3, %c0_4] : memref<8x288xf32, #tpu.memory_space<vmem>>, vector<8x288xf32>
    tpu.vector_store %arg9[%c0_3, %c0_4], %2 {strides = array<i32>} : memref<8x288xf32, #tpu.memory_space<vmem>>, vector<8x288xf32>,
    %c0_5 = arith.constant 0 : index
    %c0_6 = arith.constant 0 : index
    %4 = vector.load %arg4[%c0_5, %c0_6] : memref<8x144xf32, #tpu.memory_space<vmem>>, vector<8x16xf32>
    %5 = arith.mulf %4, %0 : vector<8x16xf32>
    %6 = arith.addf %5, %1 : vector<8x16xf32>
    %7 = arith.truncf %6 : vector<8x16xf32> to vector<8x16xbf16>
    %c0_7 = arith.constant 0 : index
    %c0_8 = arith.constant 0 : index
    %c0_9 = arith.constant 0 : index
    %8 = vector.load %arg3[%c0_7, %c0_8, %c0_9] : memref<1x16x342xbf16, #tpu.memory_space<vmem>>, vector<1x16x288xbf16>
    %9 = vector.shape_cast %8 : vector<1x16x288xbf16> to vector<16x288xbf16>
    %c0_10 = arith.constant 0 : index
    %c0_11 = arith.constant 0 : index
    %10 = vector.load %arg9[%c0_10, %c0_11] : memref<8x288xf32, #tpu.memory_space<vmem>>, vector<8x288xf32>
    %cst_12 = arith.constant dense<0.000000e+00> : vector<8x288xf32>
    %11 = tpu.matmul %7, %9, %cst_12 {dimension_numbers = #tpu.dot_dimension_numbers<[1], [0], [0], [1], [0, 0, 1, 1], [], []>} : vector<8x16xbf16>, vector<16x288xbf16>, vector<8x288xf32> -> vector<8x288xf32>
    %12 = arith.addf %10, %11 : vector<8x288xf32>
    %c0_13 = arith.constant 0 : index
    %c0_14 = arith.constant 0 : index
    %13 = vector.load %arg9[%c0_13, %c0_14] : memref<8x288xf32, #tpu.memory_space<vmem>>, vector<8x288xf32>
    tpu.vector_store %arg9[%c0_13, %c0_14], %12 {strides = array<i32>} : memref<8x288xf32, #tpu.memory_space<vmem>>, vector<8x288xf32>,
    %c0_15 = arith.constant 0 : index
    %c16 = arith.constant 16 : index
    %14 = vector.load %arg4[%c0_15, %c16] : memref<8x144xf32, #tpu.memory_space<vmem>>, vector<8x16xf32>
    %15 = arith.mulf %14, %0 : vector<8x16xf32>
    %16 = arith.addf %15, %1 : vector<8x16xf32>
    %17 = arith.truncf %16 : vector<8x16xf32> to vector<8x16xbf16>
    %c0_16 = arith.constant 0 : index
    %c0_17 = arith.constant 0 : index
    %c1 = arith.constant 1 : index
    %18 = vector.load %arg3[%c0_16, %c0_17, %c1] : memref<1x16x342xbf16, #tpu.memory_space<vmem>>, vector<1x16x288xbf16>
    %19 = vector.shape_cast %18 : vector<1x16x288xbf16> to vector<16x288xbf16>
    %c0_18 = arith.constant 0 : index
    %c0_19 = arith.constant 0 : index
    %20 = vector.load %arg9[%c0_18, %c0_19] : memref<8x288xf32, #tpu.memory_space<vmem>>, vector<8x288xf32>
    %cst_20 = arith.constant dense<0.000000e+00> : vector<8x288xf32>
    %21 = tpu.matmul %17, %19, %cst_20 {dimension_numbers = #tpu.dot_dimension_numbers<[1], [0], [0], [1], [0, 0, 1, 1], [], []>} : vector<8x16xbf16>, vector<16x288xbf16>, vector<8x288xf32> -> vector<8x288xf32>
    %22 = arith.addf %20, %21 : vector<8x288xf32>
    %c0_21 = arith.constant 0 : index
    %c0_22 = arith.constant 0 : index
    %23 = vector.load %arg9[%c0_21, %c0_22] : memref<8x288xf32, #tpu.memory_space<vmem>>, vector<8x288xf32>
    tpu.vector_store %arg9[%c0_21, %c0_22], %22 {strides = array<i32>} : memref<8x288xf32, #tpu.memory_space<vmem>>, vector<8x288xf32>,
    %c0_23 = arith.constant 0 : index
    %c32 = arith.constant 32 : index
    %24 = vector.load %arg4[%c0_23, %c32] : memref<8x144xf32, #tpu.memory_space<vmem>>, vector<8x16xf32>
    %25 = arith.mulf %24, %0 : vector<8x16xf32>
    %26 = arith.addf %25, %1 : vector<8x16xf32>
    %27 = arith.truncf %26 : vector<8x16xf32> to vector<8x16xbf16>
    %c0_24 = arith.constant 0 : index
    %c0_25 = arith.constant 0 : index
    %c2 = arith.constant 2 : index
    %28 = vector.load %arg3[%c0_24, %c0_25, %c2] : memref<1x16x342xbf16, #tpu.memory_space<vmem>>, vector<1x16x288xbf16>
    %29 = vector.shape_cast %28 : vector<1x16x288xbf16> to vector<16x288xbf16>
    %c0_26 = arith.constant 0 : index
    %c0_27 = arith.constant 0 : index
    %30 = vector.load %arg9[%c0_26, %c0_27] : memref<8x288xf32, #tpu.memory_space<vmem>>, vector<8x288xf32>
    %cst_28 = arith.constant dense<0.000000e+00> : vector<8x288xf32>
    %31 = tpu.matmul %27, %29, %cst_28 {dimension_numbers = #tpu.dot_dimension_numbers<[1], [0], [0], [1], [0, 0, 1, 1], [], []>} : vector<8x16xbf16>, vector<16x288xbf16>, vector<8x288xf32> -> vector<8x288xf32>
    %32 = arith.addf %30, %31 : vector<8x288xf32>
    %c0_29 = arith.constant 0 : index
    %c0_30 = arith.constant 0 : index
    %33 = vector.load %arg9[%c0_29, %c0_30] : memref<8x288xf32, #tpu.memory_space<vmem>>, vector<8x288xf32>
    tpu.vector_store %arg9[%c0_29, %c0_30], %32 {strides = array<i32>} : memref<8x288xf32, #tpu.memory_space<vmem>>, vector<8x288xf32>,
    %c0_31 = arith.constant 0 : index
    %c48 = arith.constant 48 : index
    %34 = vector.load %arg4[%c0_31, %c48] : memref<8x144xf32, #tpu.memory_space<vmem>>, vector<8x16xf32>
    %35 = arith.mulf %34, %0 : vector<8x16xf32>
    %36 = arith.addf %35, %1 : vector<8x16xf32>
    %37 = arith.truncf %36 : vector<8x16xf32> to vector<8x16xbf16>
    %c0_32 = arith.constant 0 : index
    %c0_33 = arith.constant 0 : index
    %c18 = arith.constant 18 : index
    %38 = vector.load %arg3[%c0_32, %c0_33, %c18] : memref<1x16x342xbf16, #tpu.memory_space<vmem>>, vector<1x16x288xbf16>
    %39 = vector.shape_cast %38 : vector<1x16x288xbf16> to vector<16x288xbf16>
    %c0_34 = arith.constant 0 : index
    %c0_35 = arith.constant 0 : index
    %40 = vector.load %arg9[%c0_34, %c0_35] : memref<8x288xf32, #tpu.memory_space<vmem>>, vector<8x288xf32>
    %cst_36 = arith.constant dense<0.000000e+00> : vector<8x288xf32>
    %41 = tpu.matmul %37, %39, %cst_36 {dimension_numbers = #tpu.dot_dimension_numbers<[1], [0], [0], [1], [0, 0, 1, 1], [], []>} : vector<8x16xbf16>, vector<16x288xbf16>, vector<8x288xf32> -> vector<8x288xf32>
    %42 = arith.addf %40, %41 : vector<8x288xf32>
    %c0_37 = arith.constant 0 : index
    %c0_38 = arith.constant 0 : index
    %43 = vector.load %arg9[%c0_37, %c0_38] : memref<8x288xf32, #tpu.memory_space<vmem>>, vector<8x288xf32>
    tpu.vector_store %arg9[%c0_37, %c0_38], %42 {strides = array<i32>} : memref<8x288xf32, #tpu.memory_space<vmem>>, vector<8x288xf32>,
    %c0_39 = arith.constant 0 : index
    %c64 = arith.constant 64 : index
    %44 = vector.load %arg4[%c0_39, %c64] : memref<8x144xf32, #tpu.memory_space<vmem>>, vector<8x16xf32>
    %45 = arith.mulf %44, %0 : vector<8x16xf32>
    %46 = arith.addf %45, %1 : vector<8x16xf32>
    %47 = arith.truncf %46 : vector<8x16xf32> to vector<8x16xbf16>
    %c0_40 = arith.constant 0 : index
    %c0_41 = arith.constant 0 : index
    %c19 = arith.constant 19 : index
    %48 = vector.load %arg3[%c0_40, %c0_41, %c19] : memref<1x16x342xbf16, #tpu.memory_space<vmem>>, vector<1x16x288xbf16>
    %49 = vector.shape_cast %48 : vector<1x16x288xbf16> to vector<16x288xbf16>
    %c0_42 = arith.constant 0 : index
    %c0_43 = arith.constant 0 : index
    %50 = vector.load %arg9[%c0_42, %c0_43] : memref<8x288xf32, #tpu.memory_space<vmem>>, vector<8x288xf32>
    %cst_44 = arith.constant dense<0.000000e+00> : vector<8x288xf32>
    %51 = tpu.matmul %47, %49, %cst_44 {dimension_numbers = #tpu.dot_dimension_numbers<[1], [0], [0], [1], [0, 0, 1, 1], [], []>} : vector<8x16xbf16>, vector<16x288xbf16>, vector<8x288xf32> -> vector<8x288xf32>
    %52 = arith.addf %50, %51 : vector<8x288xf32>
    %c0_45 = arith.constant 0 : index
    %c0_46 = arith.constant 0 : index
    %53 = vector.load %arg9[%c0_45, %c0_46] : memref<8x288xf32, #tpu.memory_space<vmem>>, vector<8x288xf32>
    tpu.vector_store %arg9[%c0_45, %c0_46], %52 {strides = array<i32>} : memref<8x288xf32, #tpu.memory_space<vmem>>, vector<8x288xf32>,
    %c0_47 = arith.constant 0 : index
    %c80 = arith.constant 80 : index
    %54 = vector.load %arg4[%c0_47, %c80] : memref<8x144xf32, #tpu.memory_space<vmem>>, vector<8x16xf32>
    %55 = arith.mulf %54, %0 : vector<8x16xf32>
    %56 = arith.addf %55, %1 : vector<8x16xf32>
    %57 = arith.truncf %56 : vector<8x16xf32> to vector<8x16xbf16>
    %c0_48 = arith.constant 0 : index
    %c0_49 = arith.constant 0 : index
    %c20 = arith.constant 20 : index
    %58 = vector.load %arg3[%c0_48, %c0_49, %c20] : memref<1x16x342xbf16, #tpu.memory_space<vmem>>, vector<1x16x288xbf16>
    %59 = vector.shape_cast %58 : vector<1x16x288xbf16> to vector<16x288xbf16>
    %c0_50 = arith.constant 0 : index
    %c0_51 = arith.constant 0 : index
    %60 = vector.load %arg9[%c0_50, %c0_51] : memref<8x288xf32, #tpu.memory_space<vmem>>, vector<8x288xf32>
    %cst_52 = arith.constant dense<0.000000e+00> : vector<8x288xf32>
    %61 = tpu.matmul %57, %59, %cst_52 {dimension_numbers = #tpu.dot_dimension_numbers<[1], [0], [0], [1], [0, 0, 1, 1], [], []>} : vector<8x16xbf16>, vector<16x288xbf16>, vector<8x288xf32> -> vector<8x288xf32>
    %62 = arith.addf %60, %61 : vector<8x288xf32>
    %c0_53 = arith.constant 0 : index
    %c0_54 = arith.constant 0 : index
    %63 = vector.load %arg9[%c0_53, %c0_54] : memref<8x288xf32, #tpu.memory_space<vmem>>, vector<8x288xf32>
    tpu.vector_store %arg9[%c0_53, %c0_54], %62 {strides = array<i32>} : memref<8x288xf32, #tpu.memory_space<vmem>>, vector<8x288xf32>,
    %c0_55 = arith.constant 0 : index
    %c96 = arith.constant 96 : index
    %64 = vector.load %arg4[%c0_55, %c96] : memref<8x144xf32, #tpu.memory_space<vmem>>, vector<8x16xf32>
    %65 = arith.mulf %64, %0 : vector<8x16xf32>
    %66 = arith.addf %65, %1 : vector<8x16xf32>
    %67 = arith.truncf %66 : vector<8x16xf32> to vector<8x16xbf16>
    %c0_56 = arith.constant 0 : index
    %c0_57 = arith.constant 0 : index
    %c36 = arith.constant 36 : index
    %68 = vector.load %arg3[%c0_56, %c0_57, %c36] : memref<1x16x342xbf16, #tpu.memory_space<vmem>>, vector<1x16x288xbf16>
    %69 = vector.shape_cast %68 : vector<1x16x288xbf16> to vector<16x288xbf16>
    %c0_58 = arith.constant 0 : index
    %c0_59 = arith.constant 0 : index
    %70 = vector.load %arg9[%c0_58, %c0_59] : memref<8x288xf32, #tpu.memory_space<vmem>>, vector<8x288xf32>
    %cst_60 = arith.constant dense<0.000000e+00> : vector<8x288xf32>
    %71 = tpu.matmul %67, %69, %cst_60 {dimension_numbers = #tpu.dot_dimension_numbers<[1], [0], [0], [1], [0, 0, 1, 1], [], []>} : vector<8x16xbf16>, vector<16x288xbf16>, vector<8x288xf32> -> vector<8x288xf32>
    %72 = arith.addf %70, %71 : vector<8x288xf32>
    %c0_61 = arith.constant 0 : index
    %c0_62 = arith.constant 0 : index
    %73 = vector.load %arg9[%c0_61, %c0_62] : memref<8x288xf32, #tpu.memory_space<vmem>>, vector<8x288xf32>
    tpu.vector_store %arg9[%c0_61, %c0_62], %72 {strides = array<i32>} : memref<8x288xf32, #tpu.memory_space<vmem>>, vector<8x288xf32>,
    %c0_63 = arith.constant 0 : index
    %c112 = arith.constant 112 : index
    %74 = vector.load %arg4[%c0_63, %c112] : memref<8x144xf32, #tpu.memory_space<vmem>>, vector<8x16xf32>
    %75 = arith.mulf %74, %0 : vector<8x16xf32>
    %76 = arith.addf %75, %1 : vector<8x16xf32>
    %77 = arith.truncf %76 : vector<8x16xf32> to vector<8x16xbf16>
    %c0_64 = arith.constant 0 : index
    %c0_65 = arith.constant 0 : index
    %c37 = arith.constant 37 : index
    %78 = vector.load %arg3[%c0_64, %c0_65, %c37] : memref<1x16x342xbf16, #tpu.memory_space<vmem>>, vector<1x16x288xbf16>
    %79 = vector.shape_cast %78 : vector<1x16x288xbf16> to vector<16x288xbf16>
    %c0_66 = arith.constant 0 : index
    %c0_67 = arith.constant 0 : index
    %80 = vector.load %arg9[%c0_66, %c0_67] : memref<8x288xf32, #tpu.memory_space<vmem>>, vector<8x288xf32>
    %cst_68 = arith.constant dense<0.000000e+00> : vector<8x288xf32>
    %81 = tpu.matmul %77, %79, %cst_68 {dimension_numbers = #tpu.dot_dimension_numbers<[1], [0], [0], [1], [0, 0, 1, 1], [], []>} : vector<8x16xbf16>, vector<16x288xbf16>, vector<8x288xf32> -> vector<8x288xf32>
    %82 = arith.addf %80, %81 : vector<8x288xf32>
    %c0_69 = arith.constant 0 : index
    %c0_70 = arith.constant 0 : index
    %83 = vector.load %arg9[%c0_69, %c0_70] : memref<8x288xf32, #tpu.memory_space<vmem>>, vector<8x288xf32>
    tpu.vector_store %arg9[%c0_69, %c0_70], %82 {strides = array<i32>} : memref<8x288xf32, #tpu.memory_space<vmem>>, vector<8x288xf32>,
    %c0_71 = arith.constant 0 : index
    %c128 = arith.constant 128 : index
    %84 = vector.load %arg4[%c0_71, %c128] : memref<8x144xf32, #tpu.memory_space<vmem>>, vector<8x16xf32>
    %85 = arith.mulf %84, %0 : vector<8x16xf32>
    %86 = arith.addf %85, %1 : vector<8x16xf32>
    %87 = arith.truncf %86 : vector<8x16xf32> to vector<8x16xbf16>
    %c0_72 = arith.constant 0 : index
    %c0_73 = arith.constant 0 : index
    %c38 = arith.constant 38 : index
    %88 = vector.load %arg3[%c0_72, %c0_73, %c38] : memref<1x16x342xbf16, #tpu.memory_space<vmem>>, vector<1x16x288xbf16>
    %89 = vector.shape_cast %88 : vector<1x16x288xbf16> to vector<16x288xbf16>
    %c0_74 = arith.constant 0 : index
    %c0_75 = arith.constant 0 : index
    %90 = vector.load %arg9[%c0_74, %c0_75] : memref<8x288xf32, #tpu.memory_space<vmem>>, vector<8x288xf32>
    %cst_76 = arith.constant dense<0.000000e+00> : vector<8x288xf32>
    %91 = tpu.matmul %87, %89, %cst_76 {dimension_numbers = #tpu.dot_dimension_numbers<[1], [0], [0], [1], [0, 0, 1, 1], [], []>} : vector<8x16xbf16>, vector<16x288xbf16>, vector<8x288xf32> -> vector<8x288xf32>
    %92 = arith.addf %90, %91 : vector<8x288xf32>
    %c0_77 = arith.constant 0 : index
    %c0_78 = arith.constant 0 : index
    %93 = vector.load %arg9[%c0_77, %c0_78] : memref<8x288xf32, #tpu.memory_space<vmem>>, vector<8x288xf32>
    tpu.vector_store %arg9[%c0_77, %c0_78], %92 {strides = array<i32>} : memref<8x288xf32, #tpu.memory_space<vmem>>, vector<8x288xf32>,
    %c0_79 = arith.constant 0 : index
    %c0_80 = arith.constant 0 : index
    %94 = vector.load %arg9[%c0_79, %c0_80] : memref<8x288xf32, #tpu.memory_space<vmem>>, vector<8x288xf32>
    %c0_81 = arith.constant 0 : index
    %c0_82 = arith.constant 0 : index
    %95 = vector.load %arg7[%c0_81, %c0_82] : memref<8x1xf32, #tpu.memory_space<vmem>>, vector<8x1xf32>
    %96 = vector.broadcast %95 : vector<8x1xf32> to vector<8x288xf32>
    %97 = arith.addf %94, %96 : vector<8x288xf32>
    %c0_83 = arith.constant 0 : index
    %c0_84 = arith.constant 0 : index
    %c0_85 = arith.constant 0 : index
    %98 = vector.load %arg8[%c0_83, %c0_84, %c0_85] : memref<1x8x288xf32, #tpu.memory_space<vmem>>, vector<1x8x288xf32>
    %99 = vector.shape_cast %98 : vector<1x8x288xf32> to vector<8x288xf32>
    %100 = vector.shape_cast %97 : vector<8x288xf32> to vector<1x8x288xf32>
    tpu.vector_store %arg8[%c0_83, %c0_84, %c0_85], %100 {strides = array<i32>} : memref<1x8x288xf32, #tpu.memory_space<vmem>>, vector<1x8x288xf32>,
    return
  }
  func.func @transform_0(%arg0: i32, %arg1: i32, %arg2: i32) -> (i32, i32, i32) {
    %c0_i32 = arith.constant 0 : i32
    %c0_i32_0 = arith.constant 0 : i32
    %c0_i32_1 = arith.constant 0 : i32
    return %arg0, %c0_i32, %c0_i32_0 : i32, i32, i32
  }
  func.func @transform_1(%arg0: i32, %arg1: i32, %arg2: i32) -> (i32, i32) {
    %c0_i32 = arith.constant 0 : i32
    %c0_i32_0 = arith.constant 0 : i32
    return %arg1, %c0_i32 : i32, i32
  }
  func.func @transform_2(%arg0: i32, %arg1: i32, %arg2: i32) -> (i32, i32) {
    %c0_i32 = arith.constant 0 : i32
    %c0_i32_0 = arith.constant 0 : i32
    return %arg1, %c0_i32 : i32, i32
  }
  func.func @transform_3(%arg0: i32, %arg1: i32, %arg2: i32) -> (i32, i32) {
    %c0_i32 = arith.constant 0 : i32
    %c0_i32_0 = arith.constant 0 : i32
    return %arg1, %c0_i32 : i32, i32
  }
  func.func @transform_4(%arg0: i32, %arg1: i32, %arg2: i32) -> (i32, i32) {
    %c0_i32 = arith.constant 0 : i32
    %c0_i32_0 = arith.constant 0 : i32
    return %arg1, %c0_i32 : i32, i32
  }
  func.func @transform_5(%arg0: i32, %arg1: i32, %arg2: i32) -> (i32, i32, i32) {
    %c0_i32 = arith.constant 0 : i32
    return %arg0, %arg1, %arg2 : i32, i32, i32
  }
}

</mosaic_0001>

<llo_original>
// kernel: tpu_custom_call.1
$region0: #{tpu_custom_call.1}
  #allocation0 [shape = 'u32[]', space=smem, size = 0x4, offset = 0x4, fixed_abs, tag = 'smem constant byte address 0x4 - core index']
  #allocation1 [shape = 'u32[144,128]{1,0:T(1,128)}', space=vmem, size = 0x12000, scoped, tag = 'internal scratch']
  #allocation2 [shape = 'f32[8,288]{1,0:T(8,128)}', space=vmem, size = 0x3000, scoped, tag = 'scratch operand']
  %s0 = inlined_call_operand.hbm [shape: bf16[2,16,342], index: 0, kind: input, shape index: {}]
  %s1 = inlined_call_operand.hbm [shape: f32[8,144], index: 1, kind: input, shape index: {}]
  %s2 = inlined_call_operand.vmem [shape: f32[8,16], index: 2, kind: input, shape index: {}]
  %s3 = inlined_call_operand.hbm [shape: f32[8,16], index: 3, kind: input, shape index: {}]
  %s4 = inlined_call_operand.vmem [shape: f32[8,1], index: 4, kind: input, shape index: {}]
  %s5 = inlined_call_operand.hbm [shape: f32[2,8,288], index: 5, kind: output, shape index: {}]
  %s6 = sld [smem:[#allocation0]]
  $region65: #{tpu_custom_call.1} parent=0
    _
  %s8 = ssub.s32 1, %s6
  %s9 = scalar_select 0, %s8, %s6
  $region1: #{tpu_custom_call.1} parent=0
    #allocation3 [shape = 'u8[24576]{0}', space=vmem, size = 0x6000, scoped, tag = 'input window, operand 0']
    #allocation4 [shape = 's32[2]{0}', space=sflag, size = 0x8, scoped, tag = 'scoped memory for tpu_custom_call.1']
    #allocation5 [shape = 's32[2]{0}', space=sflag, size = 0x8, scoped, tag = 'scoped memory for tpu_custom_call.1']
    #allocation6 [shape = 'u8[8192]{0}', space=vmem, size = 0x2000, scoped, tag = 'input window, operand 1, single buffered']
    #allocation7 [shape = 's32[1]{0}', space=sflag, size = 0x4, scoped, tag = 'scoped memory for tpu_custom_call.1']
    #allocation8 [shape = 'u8[4096]{0}', space=vmem, size = 0x1000, scoped, tag = 'input window, operand 3, single buffered']
    #allocation9 [shape = 'u8[24576]{0}', space=vmem, size = 0x6000, scoped, tag = 'output window, operand 0']
    %10 = vsyncpa [#allocation4], 0
    %s11 = scalar_lea.sflag [#allocation4], 1
    %12 = vsyncpa %s11, 0
    %13 = vsyncpa [#allocation7], 0
    %14 = vsyncpa [#allocation5], 0
    %s15 = scalar_lea.sflag [#allocation5], 1
    %16 = vsyncpa %s15, 0
    loop: start=0, step=1, limit=4
    $region2: #{tpu_custom_call.1} parent=1 // loop_pre_header
      _
    $region3: #{tpu_custom_call.1} parent=1 // loop_header
      %s18 = sphi 0, %s22
      %p19 = scmp.ge.s32.totalorder %s18, 4
      %s25 = sphi 0, %s44
      %s26 = sphi 0, %s40
      %s27 = sphi 0, %s36
      %s28 = sphi 0, %s25
      %s29 = sphi 0, %s26
      %s30 = sphi 0, %s27
      %s31 = sphi 0, %s28
      %s32 = sphi 0, %s29
      %s33 = sphi 0, %s30
      %s47 = sphi 0, %s49
      %s50 = sphi 0, %s47
      %s51 = sphi 0, %s50
      %s67 = sphi 0, %s51
      %s73 = sphi 0, %s75
      %s76 = sphi 0, %s73
      %s77 = sphi 0, %s76
      %s93 = sphi 0, %s77
      %s99 = sphi 0, %s101
      %s102 = sphi 0, %s99
      %s103 = sphi 0, %s102
      %s119 = sphi 0, %s103
      %s125 = sphi 0, %s127
      %s128 = sphi 0, %s125
      %s129 = sphi 0, %s128
      %s145 = sphi 0, %s129
      %s151 = sphi 0, %s153
      %s154 = sphi 0, %s151
      %s155 = sphi 0, %s154
      %s171 = sphi 0, %s155
      %s181 = sphi 0, %s183
      %s184 = sphi 0, %s181
      %s185 = sphi 0, %s184
      %s201 = sphi 0, %s185
    $region4: #{tpu_custom_call.1} parent=1 // loop_header_branch
      %21 = sbr.rel (%p19) target = $region8
    $region5: #{tpu_custom_call.1} parent=1 // loop_body
      %s23 = ssub.s32 %s18, 1
      %s24 = ssub.s32 %s18, 2
      %s34 = sadd.s32 1, %s27
      %p35 = scmp.ge.s32.totalorder %s34, 1
      %s36 = scalar_select %p35, 0, %s34
      %s37 = sadd.s32 1, %s26
      %s38 = scalar_select %p35, %s37, %s26
      %p39 = scmp.ge.s32.totalorder %s38, 1
      %s40 = scalar_select %p39, 0, %s38
      %s41 = sadd.s32 1, %s25
      %s42 = scalar_select %p39, %s41, %s25
      %p43 = scmp.ge.s32.totalorder %s42, 2
      %s44 = scalar_select %p43, 0, %s42
      %s45 = ssub.s32 %s25, %s44
      %p46 = scmp.eq.s32.totalorder %s45, 0
      %s48 = sadd.s32 %s47, 1
      %s49 = scalar_select %p46, %s47, %s48
      %p52 = pneg %p46
      %p53 = scmp.eq.s32.totalorder %s18, 1
      %p54 = por %p52, %p53
      %p55 = scmp.ne.s32.totalorder %s47, %s50
      %p56 = scmp.eq.s32.totalorder %s18, 0
      %p57 = por %p55, %p56
      %p58 = scmp.ne.s32.totalorder %s47, %s50
      %p59 = scmp.eq.s32.totalorder %s23, 1
      %p60 = por %p58, %p59
      %p61 = scmp.ne.s32.totalorder %s50, %s51
      %p62 = scmp.eq.s32.totalorder %s23, 0
      %p63 = por %p61, %p62
      %p64 = scmp.ne.s32.totalorder %s50, %s51
      %p65 = scmp.eq.s32.totalorder %s24, 1
      %p66 = por %p64, %p65
      %p68 = scmp.ne.s32.totalorder %s51, %s67
      %p69 = scmp.eq.s32.totalorder %s24, 0
      %p70 = por %p68, %p69
      %s71 = ssub.s32 %s26, %s40
      %p72 = scmp.eq.s32.totalorder %s71, 0
      %s74 = sadd.s32 %s73, 1
      %s75 = scalar_select %p72, %s73, %s74
      %p78 = pneg %p72
      %p79 = scmp.eq.s32.totalorder %s18, 1
      %p80 = por %p78, %p79
      %p81 = scmp.ne.s32.totalorder %s73, %s76
      %p82 = scmp.eq.s32.totalorder %s18, 0
      %p83 = por %p81, %p82
      %p84 = scmp.ne.s32.totalorder %s73, %s76
      %p85 = scmp.eq.s32.totalorder %s23, 1
      %p86 = por %p84, %p85
      %p87 = scmp.ne.s32.totalorder %s76, %s77
      %p88 = scmp.eq.s32.totalorder %s23, 0
      %p89 = por %p87, %p88
      %p90 = scmp.ne.s32.totalorder %s76, %s77
      %p91 = scmp.eq.s32.totalorder %s24, 1
      %p92 = por %p90, %p91
      %p94 = scmp.ne.s32.totalorder %s77, %s93
      %p95 = scmp.eq.s32.totalorder %s24, 0
      %p96 = por %p94, %p95
      %s97 = ssub.s32 %s26, %s40
      %p98 = scmp.eq.s32.totalorder %s97, 0
      %s100 = sadd.s32 %s99, 1
      %s101 = scalar_select %p98, %s99, %s100
      %p104 = pneg %p98
      %p105 = scmp.eq.s32.totalorder %s18, 1
      %p106 = por %p104, %p105
      %p107 = scmp.ne.s32.totalorder %s99, %s102
      %p108 = scmp.eq.s32.totalorder %s18, 0
      %p109 = por %p107, %p108
      %p110 = scmp.ne.s32.totalorder %s99, %s102
      %p111 = scmp.eq.s32.totalorder %s23, 1
      %p112 = por %p110, %p111
      %p113 = scmp.ne.s32.totalorder %s102, %s103
      %p114 = scmp.eq.s32.totalorder %s23, 0
      %p115 = por %p113, %p114
      %p116 = scmp.ne.s32.totalorder %s102, %s103
      %p117 = scmp.eq.s32.totalorder %s24, 1
      %p118 = por %p116, %p117
      %p120 = scmp.ne.s32.totalorder %s103, %s119
      %p121 = scmp.eq.s32.totalorder %s24, 0
      %p122 = por %p120, %p121
      %s123 = ssub.s32 %s26, %s40
      %p124 = scmp.eq.s32.totalorder %s123, 0
      %s126 = sadd.s32 %s125, 1
      %s127 = scalar_select %p124, %s125, %s126
      %p130 = pneg %p124
      %p131 = scmp.eq.s32.totalorder %s18, 1
      %p132 = por %p130, %p131
      %p133 = scmp.ne.s32.totalorder %s125, %s128
      %p134 = scmp.eq.s32.totalorder %s18, 0
      %p135 = por %p133, %p134
      %p136 = scmp.ne.s32.totalorder %s125, %s128
      %p137 = scmp.eq.s32.totalorder %s23, 1
      %p138 = por %p136, %p137
      %p139 = scmp.ne.s32.totalorder %s128, %s129
      %p140 = scmp.eq.s32.totalorder %s23, 0
      %p141 = por %p139, %p140
      %p142 = scmp.ne.s32.totalorder %s128, %s129
      %p143 = scmp.eq.s32.totalorder %s24, 1
      %p144 = por %p142, %p143
      %p146 = scmp.ne.s32.totalorder %s129, %s145
      %p147 = scmp.eq.s32.totalorder %s24, 0
      %p148 = por %p146, %p147
      %s149 = ssub.s32 %s26, %s40
      %p150 = scmp.eq.s32.totalorder %s149, 0
      %s152 = sadd.s32 %s151, 1
      %s153 = scalar_select %p150, %s151, %s152
      %p156 = pneg %p150
      %p157 = scmp.eq.s32.totalorder %s18, 1
      %p158 = por %p156, %p157
      %p159 = scmp.ne.s32.totalorder %s151, %s154
      %p160 = scmp.eq.s32.totalorder %s18, 0
      %p161 = por %p159, %p160
      %p162 = scmp.ne.s32.totalorder %s151, %s154
      %p163 = scmp.eq.s32.totalorder %s23, 1
      %p164 = por %p162, %p163
      %p165 = scmp.ne.s32.totalorder %s154, %s155
      %p166 = scmp.eq.s32.totalorder %s23, 0
      %p167 = por %p165, %p166
      %p168 = scmp.ne.s32.totalorder %s154, %s155
      %p169 = scmp.eq.s32.totalorder %s24, 1
      %p170 = por %p168, %p169
      %p172 = scmp.ne.s32.totalorder %s155, %s171
      %p173 = scmp.eq.s32.totalorder %s24, 0
      %p174 = por %p172, %p173
      %s175 = ssub.s32 %s25, %s44
      %s176 = ssub.s32 %s26, %s40
      %s177 = sor.u32 %s175, %s176
      %s178 = ssub.s32 %s27, %s36
      %s179 = sor.u32 %s177, %s178
      %p180 = scmp.eq.s32.totalorder %s179, 0
      %s182 = sadd.s32 %s181, 1
      %s183 = scalar_select %p180, %s181, %s182
      %p186 = pneg %p180
      %p187 = scmp.eq.s32.totalorder %s18, 1
      %p188 = por %p186, %p187
      %p189 = scmp.ne.s32.totalorder %s181, %s184
      %p190 = scmp.eq.s32.totalorder %s18, 0
      %p191 = por %p189, %p190
      %p192 = scmp.ne.s32.totalorder %s181, %s184
      %p193 = scmp.eq.s32.totalorder %s23, 1
      %p194 = por %p192, %p193
      %p195 = scmp.ne.s32.totalorder %s184, %s185
      %p196 = scmp.eq.s32.totalorder %s23, 0
      %p197 = por %p195, %p196
      %p198 = scmp.ne.s32.totalorder %s184, %s185
      %p199 = scmp.eq.s32.totalorder %s24, 1
      %p200 = por %p198, %p199
      %p202 = scmp.ne.s32.totalorder %s185, %s201
      %p203 = scmp.eq.s32.totalorder %s24, 0
      %p204 = por %p202, %p203
      %p205 = scmp.le.s32.totalorder 1, %s18
      %p206 = scmp.lt.s32.totalorder %s18, 3
      %p207 = pnand %p205, %p206
      %p208 = pneg %p207
      // Predicated region
      $region9: #{tpu_custom_call.1} parent=5 // pred_check
        _
      $region10: #{tpu_custom_call.1} parent=5 // pred_check_branch
        %210 = sbr.rel (%p207) target = $region12
      $region11: #{tpu_custom_call.1} parent=5 // pred_region
        %s211 = ssub.s32 %s18, 1
        // Predicated region
        $region13: #{tpu_custom_call.1} parent=11 // pred_check
          %p212 = pneg %p89
        $region14: #{tpu_custom_call.1} parent=11 // pred_check_branch
          %214 = sbr.rel (%p212) target = $region16
        $region15: #{tpu_custom_call.1} parent=11 // pred_region
          %s216 = ssub.s32 256, 256
          %217 = vsyncadd [#allocation7], %s216
          %s218 = smul.addr %s29, 2
          %s219 = smul.addr %s218, 128
          %s220 = scalar_lea.hbm %s1, %s219
          %s222 = sshll.u32 [#allocation6], 4
          %s223 = int_to_ptr.vmem [resolvable:$true] %s222
          %225 = dma.hbm_to_vmem [thread:$0]  %s220, 256, %s223, [#allocation7]
        $region16: #{tpu_custom_call.1} parent=11 // pred_fallthru
          _
        // Predicated region
        $region17: #{tpu_custom_call.1} parent=11 // pred_check
          %p226 = pneg %p115
        $region18: #{tpu_custom_call.1} parent=11 // pred_check_branch
          %228 = sbr.rel (%p226) target = $region20
        $region19: #{tpu_custom_call.1} parent=11 // pred_region
          %p229 = scmp.lt.s32.totalorder %s29, 0
          %s230 = scalar_select %p229, %s29, 0
          %s231 = smul.addr %s230, 8
          %s232 = scalar_lea.vmem %s2, %s231
        $region20: #{tpu_custom_call.1} parent=11 // pred_fallthru
          _
        // Predicated region
        $region21: #{tpu_custom_call.1} parent=11 // pred_check
          %p233 = pneg %p141
        $region22: #{tpu_custom_call.1} parent=11 // pred_check_branch
          %235 = sbr.rel (%p233) target = $region24
        $region23: #{tpu_custom_call.1} parent=11 // pred_region
          %s237 = ssub.s32 128, 128
          %238 = vsyncadd [#allocation7], %s237
          %s239 = smul.addr %s29, 128
          %s240 = scalar_lea.hbm %s3, %s239
          %s242 = sshll.u32 [#allocation8], 4
          %s243 = int_to_ptr.vmem [resolvable:$true] %s242
          %245 = dma.hbm_to_vmem [thread:$0]  %s240, 128, %s243, [#allocation7]
        $region24: #{tpu_custom_call.1} parent=11 // pred_fallthru
          _
        // Predicated region
        $region25: #{tpu_custom_call.1} parent=11 // pred_check
          %p246 = pneg %p167
        $region26: #{tpu_custom_call.1} parent=11 // pred_check_branch
          %248 = sbr.rel (%p246) target = $region28
        $region27: #{tpu_custom_call.1} parent=11 // pred_region
          %p249 = scmp.lt.s32.totalorder %s29, 0
          %s250 = scalar_select %p249, %s29, 0
          %s251 = smul.addr %s250, 8
          %s252 = scalar_lea.vmem %s4, %s251
        $region28: #{tpu_custom_call.1} parent=11 // pred_fallthru
          _
      $region12: #{tpu_custom_call.1} parent=5 // pred_fallthru
        _
      %p253 = scmp.lt.s32.totalorder %s18, 2
      // Predicated region
      $region29: #{tpu_custom_call.1} parent=5 // pred_check
        %p254 = pneg %p253
      $region30: #{tpu_custom_call.1} parent=5 // pred_check_branch
        %256 = sbr.rel (%p254) target = $region32
      $region31: #{tpu_custom_call.1} parent=5 // pred_region
        // Predicated region
        $region33: #{tpu_custom_call.1} parent=31 // pred_check
          %p257 = pneg %p57
        $region34: #{tpu_custom_call.1} parent=31 // pred_check_branch
          %259 = sbr.rel (%p257) target = $region36
        $region35: #{tpu_custom_call.1} parent=31 // pred_region
          %s260 = sand.u32 %s47, 1
          %s261 = scalar_lea.sflag [#allocation4], %s260
          %s262 = sand.u32 %s47, 1
          %s263 = smul.addr %s262, 24
          %s264 = scalar_lea.vmem [#allocation3], %s263
          %s266 = ssub.s32 384, 384
          %267 = vsyncadd %s261, %s266
          %s268 = smul.addr %s25, 6
          %s269 = smul.addr %s268, 64
          %s270 = scalar_lea.hbm %s0, %s269
          %s271 = sshll.u32 %s264, 4
          %s272 = int_to_ptr.vmem [resolvable:$true] %s271
          %277 = dma.hbm_to_vmem [thread:$0]  %s270, 384, %s272, %s261, 192, 192, 12
        $region36: #{tpu_custom_call.1} parent=31 // pred_fallthru
          _
      $region32: #{tpu_custom_call.1} parent=5 // pred_fallthru
        _
      %p278 = scmp.le.s32.totalorder 1, %s18
      %p279 = scmp.lt.s32.totalorder %s18, 3
      %p280 = pnand %p278, %p279
      %p281 = pneg %p280
      // Predicated region
      $region37: #{tpu_custom_call.1} parent=5 // pred_check
        _
      $region38: #{tpu_custom_call.1} parent=5 // pred_check_branch
        %283 = sbr.rel (%p280) target = $region40
      $region39: #{tpu_custom_call.1} parent=5 // pred_region
        %s284 = ssub.s32 %s18, 1
        %s285 = sand.u32 %s50, 1
        %s286 = scalar_lea.sflag [#allocation4], %s285
        %s287 = sand.u32 %s50, 1
        %s288 = smul.addr %s287, 24
        %s289 = scalar_lea.vmem [#allocation3], %s288
        // Predicated region
        $region41: #{tpu_custom_call.1} parent=39 // pred_check
          %p290 = pneg %p63
        $region42: #{tpu_custom_call.1} parent=39 // pred_check_branch
          %292 = sbr.rel (%p290) target = $region44
        $region43: #{tpu_custom_call.1} parent=39 // pred_region
          %293 = dma.done %s286, 384
        $region44: #{tpu_custom_call.1} parent=39 // pred_fallthru
          _
        // Predicated region
        $region45: #{tpu_custom_call.1} parent=39 // pred_check
          %p294 = pneg %p89
        $region46: #{tpu_custom_call.1} parent=39 // pred_check_branch
          %296 = sbr.rel (%p294) target = $region48
        $region47: #{tpu_custom_call.1} parent=39 // pred_region
          %297 = dma.done [#allocation7], 256
        $region48: #{tpu_custom_call.1} parent=39 // pred_fallthru
          _
        // Predicated region
        $region49: #{tpu_custom_call.1} parent=39 // pred_check
          %p298 = pneg %p141
        $region50: #{tpu_custom_call.1} parent=39 // pred_check_branch
          %300 = sbr.rel (%p298) target = $region52
        $region51: #{tpu_custom_call.1} parent=39 // pred_region
          %301 = dma.done [#allocation7], 128
        $region52: #{tpu_custom_call.1} parent=39 // pred_fallthru
          _
        %s302 = sand.u32 %s50, 1
        %s303 = scalar_lea.sflag [#allocation4], %s302
        %s304 = sand.u32 %s50, 1
        %s305 = smul.addr %s304, 24
        %s306 = scalar_lea.vmem [#allocation3], %s305
        %p307 = pneg %p63
        %p308 = pneg %p60
        %p309 = pneg %p89
        %p310 = pneg %p86
        %p311 = scmp.lt.s32.totalorder %s29, 0
        %s312 = scalar_select %p311, %s29, 0
        %s313 = smul.addr %s312, 8
        %s314 = scalar_lea.vmem %s2, %s313
        %p315 = pneg %p115
        %p316 = pneg %p112
        %p317 = pneg %p141
        %p318 = pneg %p138
        %p319 = scmp.lt.s32.totalorder %s29, 0
        %s320 = scalar_select %p319, %s29, 0
        %s321 = smul.addr %s320, 8
        %s322 = scalar_lea.vmem %s4, %s321
        %p323 = pneg %p167
        %p324 = pneg %p164
        %p325 = pneg %p197
        %p326 = pneg %p194
        %s327 = sand.u32 %s184, 1
        %s328 = scalar_lea.sflag [#allocation5], %s327
        %s329 = sand.u32 %s184, 1
        %s330 = smul.addr %s329, 24
        %s331 = scalar_lea.vmem [#allocation9], %s330
        %p332 = scmp.lt.s32.totalorder %s29, 0
        %s333 = scalar_select %p332, %s29, 0
        %s334 = smul.addr %s333, 8
        %s335 = scalar_lea.vmem %s2, %s334
        %p336 = scmp.lt.s32.totalorder %s29, 0
        %s337 = scalar_select %p336, %s29, 0
        %s338 = smul.addr %s337, 8
        %s339 = scalar_lea.vmem %s4, %s338
        %s340 = smul.u32 3, %s30
        %v342 = vld [vmem:[%s335] sm:$0xff]
        %v343 = vld [vmem:[#allocation8] sm:$0xff]
        %344 = vst [vmem:[#allocation2] sm:$0xff] 0.0
        %345 = vst [vmem:[#allocation2 + $0x8] sm:$0xff] 0.0
        %vm346 = vcmask 261120
        %347 = vst.msk [vmem:[#allocation2 + $0x10] sm:$0xff] %vm346, 0.0
        %v348 = vld [vmem:[#allocation6] sm:$0xff]
        %v349 = vmul.f32 %v348, %v342
        %v350 = vadd.f32 %v349, %v343
        %v351 = vpack.c.bf16 %v350, %v350
        %v352 = vld [vmem:[%s289] sm:$0xff]
        %v353 = vld [vmem:[%s289 + $0x8] sm:$0xf]
        %v354 = vld [vmem:[%s289 + $0xc] sm:$0xff]
        %v355 = vld [vmem:[%s289 + $0x14] sm:$0xf]
        %v356 = vld [vmem:[#allocation2] sm:$0xff]
        %v357 = vld [vmem:[#allocation2 + $0x8] sm:$0xff]
        %v358 = vld [vmem:[#allocation2 + $0x10] sm:$0xff]
        %v363 = vunpack.c.l.b16 %v352
        %v364 = vunpack.c.h.b16 %v352
        %v365 = vunpack.c.l.b16 %v353
        %v366 = vunpack.c.l.b16 %v354
        %v367 = vunpack.c.h.b16 %v354
        %v368 = vunpack.c.l.b16 %v355
        %v369 = vpack.c.b16 %v366, %v363
        %v370 = vpack.c.b16 %v367, %v364
        %v371 = vpack.c.b16 %v368, %v365
        %vm375 = vcmask 130048
        %v377 = vsel %vm375, %v351, 0
        %379 = vmatprep.subr.bf16.mxu0 0
        %380 = vmatpush1.bf16.msra.mxu0 0
        %381 = vmatprep.subr.bf16.mxu0 0
        %382 = vmatpush1.bf16.msra.mxu0 0
        %383 = vmatprep.subr.bf16.mxu0 0
        %384 = vmatpush1.bf16.msra.mxu0 0
        %385 = vmatprep.subr.bf16.mxu0 0
        %386 = vmatpush1.bf16.msra.mxu0 0
        %387 = vmatprep.subr.bf16.mxu0 0
        %388 = vmatpush1.bf16.msra.mxu0 0
        %389 = vmatprep.subr.bf16.mxu0 0
        %390 = vmatpush1.bf16.msra.mxu0 0
        %391 = vmatprep.subr.bf16.mxu0 0
        %392 = vmatpush1.bf16.msra.mxu0 0
        %393 = vmatprep.subr.bf16.mxu0 %v370
        %394 = vmatpush1.bf16.msra.mxu0 %v369
        %395 = vmatprep.subr.bf16.mxu0 0
        %396 = vmatpush2.bf16.msra.mxu0 0
        %397 = vmatprep.subr.bf16.mxu0 0
        %398 = vmatpush2.bf16.msra.mxu0 0
        %399 = vmatprep.subr.bf16.mxu0 0
        %400 = vmatpush2.bf16.msra.mxu0 0
        %401 = vmatprep.subr.bf16.mxu0 0
        %402 = vmatpush2.bf16.msra.mxu0 0
        %403 = vmatprep.subr.bf16.mxu0 0
        %404 = vmatpush2.bf16.msra.mxu0 0
        %405 = vmatprep.subr.bf16.mxu0 0
        %406 = vmatpush2.bf16.msra.mxu0 0
        %407 = vmatprep.subr.bf16.mxu0 0
        %408 = vmatpush2.bf16.msra.mxu0 0
        %409 = vmatprep.subr.bf16.mxu0 0
        %410 = vmatpush2.bf16.msra.mxu0 0
        %411 = vmatprep.mubr.bf16.mxu0 0
        %412 = vmatmul.mubr.bf16.gmra.mxu0 %v377
        %v413 = vpop.f32.mrf.mxu0
        %v414 = vadd.f32 0.0, %v413
        %v415 = vpop.f32.mrf.mxu0
        %v416 = vadd.f32 0.0, %v415
        %v417 = vpop.f32.mrf.mxu0
        %v418 = vpop.f32.mrf.mxu0
        %419 = vdwg.mxu0
        %420 = vmatprep.subr.bf16.mxu0 0
        %421 = vmatpush1.bf16.msra.mxu0 0
        %422 = vmatprep.subr.bf16.mxu0 0
        %423 = vmatpush1.bf16.msra.mxu0 0
        %424 = vmatprep.subr.bf16.mxu0 0
        %425 = vmatpush1.bf16.msra.mxu0 0
        %426 = vmatprep.subr.bf16.mxu0 0
        %427 = vmatpush1.bf16.msra.mxu0 0
        %428 = vmatprep.subr.bf16.mxu0 0
        %429 = vmatpush1.bf16.msra.mxu0 0
        %430 = vmatprep.subr.bf16.mxu0 0
        %431 = vmatpush1.bf16.msra.mxu0 0
        %432 = vmatprep.subr.bf16.mxu0 0
        %433 = vmatpush1.bf16.msra.mxu0 0
        %434 = vmatprep.subr.bf16.mxu0 0
        %435 = vmatpush1.bf16.msra.mxu0 %v371
        %436 = vmatprep.subr.bf16.mxu0 0
        %437 = vmatpush2.bf16.msra.mxu0 0
        %438 = vmatprep.subr.bf16.mxu0 0
        %439 = vmatpush2.bf16.msra.mxu0 0
        %440 = vmatprep.subr.bf16.mxu0 0
        %441 = vmatpush2.bf16.msra.mxu0 0
        %442 = vmatprep.subr.bf16.mxu0 0
        %443 = vmatpush2.bf16.msra.mxu0 0
        %444 = vmatprep.subr.bf16.mxu0 0
        %445 = vmatpush2.bf16.msra.mxu0 0
        %446 = vmatprep.subr.bf16.mxu0 0
        %447 = vmatpush2.bf16.msra.mxu0 0
        %448 = vmatprep.subr.bf16.mxu0 0
        %449 = vmatpush2.bf16.msra.mxu0 0
        %450 = vmatprep.subr.bf16.mxu0 0
        %451 = vmatpush2.bf16.msra.mxu0 0
        %452 = vmatprep.mubr.bf16.mxu0 0
        %453 = vmatmul.mubr.bf16.gmra.mxu0 %v377
        %v454 = vpop.f32.mrf.mxu0
        %v455 = vadd.f32 0.0, %v454
        %v456 = vpop.f32.mrf.mxu0
        %v457 = vpop.f32.mrf.mxu0
        %v458 = vpop.f32.mrf.mxu0
        %459 = vdwg.mxu0
        %v460 = vadd.f32 %v356, %v414
        %v461 = vadd.f32 %v357, %v416
        %v462 = vadd.f32 %v358, %v455
        %463 = vst [vmem:[#allocation2] sm:$0xff] %v460
        %464 = vst [vmem:[#allocation2 + $0x8] sm:$0xff] %v461
        %465 = vst.msk [vmem:[#allocation2 + $0x10] sm:$0xff] %vm346, %v462
        %v466 = vld [vmem:[#allocation6] sm:$0xff]
        %468 = vrot.lane.b32.xlu0 %v342, 16
        %v469 = vpop.permute.xlu0 %468
        %v471 = vmul.f32 %v466, %v469
        %473 = vrot.lane.b32.xlu0 %v343, 16
        %v474 = vpop.permute.xlu0 %473
        %v476 = vadd.f32 %v471, %v474
        %v477 = vpack.c.bf16 %v476, %v476
        %v478 = vld [vmem:[%s289] sm:$0xff]
        %v479 = vld [vmem:[%s289 + $0x8] sm:$0xf]
        %v480 = vld [vmem:[%s289 + $0xc] sm:$0xff]
        %v481 = vld [vmem:[%s289 + $0x14] sm:$0xf]
        %v482 = vld [vmem:[#allocation2] sm:$0xff]
        %v483 = vld [vmem:[#allocation2 + $0x8] sm:$0xff]
        %v484 = vld [vmem:[#allocation2 + $0x10] sm:$0xff]
        %486 = vrot.lane.b32.xlu0 %v477, 112
        %v487 = vpop.permute.xlu0 %486
        %v492 = vunpack.c.l.b16 %v478
        %v493 = vunpack.c.h.b16 %v478
        %v494 = vunpack.c.l.b16 %v479
        %v495 = vunpack.c.l.b16 %v480
        %v496 = vunpack.c.h.b16 %v480
        %v497 = vunpack.c.l.b16 %v481
        %v498 = vpack.c.b16 %v495, %v492
        %v499 = vpack.c.b16 %v496, %v493
        %v500 = vpack.c.b16 %v497, %v494
        %501 = vrot.lane.b32.xlu0 %v498, 127
        %v502 = vpop.permute.xlu0 %501
        %503 = vrot.lane.b32.xlu0 %v499, 127
        %v504 = vpop.permute.xlu0 %503
        %505 = vrot.lane.b32.xlu0 %v500, 127
        %v506 = vpop.permute.xlu0 %505
        %vm507 = vcmask 1039360
        %v508 = vsel %vm507, %v502, %v504
        %v509 = vsel %vm507, %v504, %v506
        %v514 = vsel %vm375, %v487, 0
        %516 = vmatprep.subr.bf16.mxu0 0
        %517 = vmatpush1.bf16.msra.mxu0 0
        %518 = vmatprep.subr.bf16.mxu0 0
        %519 = vmatpush1.bf16.msra.mxu0 0
        %520 = vmatprep.subr.bf16.mxu0 0
        %521 = vmatpush1.bf16.msra.mxu0 0
        %522 = vmatprep.subr.bf16.mxu0 0
        %523 = vmatpush1.bf16.msra.mxu0 0
        %524 = vmatprep.subr.bf16.mxu0 0
        %525 = vmatpush1.bf16.msra.mxu0 0
        %526 = vmatprep.subr.bf16.mxu0 0
        %527 = vmatpush1.bf16.msra.mxu0 0
        %528 = vmatprep.subr.bf16.mxu0 0
        %529 = vmatpush1.bf16.msra.mxu0 0
        %530 = vmatprep.subr.bf16.mxu0 %v509
        %531 = vmatpush1.bf16.msra.mxu0 %v508
        %532 = vmatprep.subr.bf16.mxu0 0
        %533 = vmatpush2.bf16.msra.mxu0 0
        %534 = vmatprep.subr.bf16.mxu0 0
        %535 = vmatpush2.bf16.msra.mxu0 0
        %536 = vmatprep.subr.bf16.mxu0 0
        %537 = vmatpush2.bf16.msra.mxu0 0
        %538 = vmatprep.subr.bf16.mxu0 0
        %539 = vmatpush2.bf16.msra.mxu0 0
        %540 = vmatprep.subr.bf16.mxu0 0
        %541 = vmatpush2.bf16.msra.mxu0 0
        %542 = vmatprep.subr.bf16.mxu0 0
        %543 = vmatpush2.bf16.msra.mxu0 0
        %544 = vmatprep.subr.bf16.mxu0 0
        %545 = vmatpush2.bf16.msra.mxu0 0
        %546 = vmatprep.subr.bf16.mxu0 0
        %547 = vmatpush2.bf16.msra.mxu0 0
        %548 = vmatprep.mubr.bf16.mxu0 0
        %549 = vmatmul.mubr.bf16.gmra.mxu0 %v514
        %v550 = vpop.f32.mrf.mxu0
        %v551 = vadd.f32 0.0, %v550
        %v552 = vpop.f32.mrf.mxu0
        %v553 = vadd.f32 0.0, %v552
        %v554 = vpop.f32.mrf.mxu0
        %v555 = vpop.f32.mrf.mxu0
        %556 = vdwg.mxu0
        %557 = vmatprep.subr.bf16.mxu0 0
        %558 = vmatpush1.bf16.msra.mxu0 0
        %559 = vmatprep.subr.bf16.mxu0 0
        %560 = vmatpush1.bf16.msra.mxu0 0
        %561 = vmatprep.subr.bf16.mxu0 0
        %562 = vmatpush1.bf16.msra.mxu0 0
        %563 = vmatprep.subr.bf16.mxu0 0
        %564 = vmatpush1.bf16.msra.mxu0 0
        %565 = vmatprep.subr.bf16.mxu0 0
        %566 = vmatpush1.bf16.msra.mxu0 0
        %567 = vmatprep.subr.bf16.mxu0 0
        %568 = vmatpush1.bf16.msra.mxu0 0
        %569 = vmatprep.subr.bf16.mxu0 0
        %570 = vmatpush1.bf16.msra.mxu0 0
        %571 = vmatprep.subr.bf16.mxu0 0
        %572 = vmatpush1.bf16.msra.mxu0 %v506
        %573 = vmatprep.subr.bf16.mxu0 0
        %574 = vmatpush2.bf16.msra.mxu0 0
        %575 = vmatprep.subr.bf16.mxu0 0
        %576 = vmatpush2.bf16.msra.mxu0 0
        %577 = vmatprep.subr.bf16.mxu0 0
        %578 = vmatpush2.bf16.msra.mxu0 0
        %579 = vmatprep.subr.bf16.mxu0 0
        %580 = vmatpush2.bf16.msra.mxu0 0
        %581 = vmatprep.subr.bf16.mxu0 0
        %582 = vmatpush2.bf16.msra.mxu0 0
        %583 = vmatprep.subr.bf16.mxu0 0
        %584 = vmatpush2.bf16.msra.mxu0 0
        %585 = vmatprep.subr.bf16.mxu0 0
        %586 = vmatpush2.bf16.msra.mxu0 0
        %587 = vmatprep.subr.bf16.mxu0 0
        %588 = vmatpush2.bf16.msra.mxu0 0
        %589 = vmatprep.mubr.bf16.mxu0 0
        %590 = vmatmul.mubr.bf16.gmra.mxu0 %v514
        %v591 = vpop.f32.mrf.mxu0
        %v592 = vadd.f32 0.0, %v591
        %v593 = vpop.f32.mrf.mxu0
        %v594 = vpop.f32.mrf.mxu0
        %v595 = vpop.f32.mrf.mxu0
        %596 = vdwg.mxu0
        %v597 = vadd.f32 %v482, %v551
        %v598 = vadd.f32 %v483, %v553
        %v599 = vadd.f32 %v484, %v592
        %600 = vst [vmem:[#allocation2] sm:$0xff] %v597
        %601 = vst [vmem:[#allocation2 + $0x8] sm:$0xff] %v598
        %602 = vst.msk [vmem:[#allocation2 + $0x10] sm:$0xff] %vm346, %v599
        %v603 = vld [vmem:[#allocation6] sm:$0xff]
        %604 = vrot.lane.b32.xlu0 %v342, 32
        %v605 = vpop.permute.xlu0 %604
        %v607 = vmul.f32 %v603, %v605
        %608 = vrot.lane.b32.xlu0 %v343, 32
        %v609 = vpop.permute.xlu0 %608
        %v611 = vadd.f32 %v607, %v609
        %v612 = vpack.c.bf16 %v611, %v611
        %v613 = vld [vmem:[%s289] sm:$0xff]
        %v614 = vld [vmem:[%s289 + $0x8] sm:$0xf]
        %v615 = vld [vmem:[%s289 + $0xc] sm:$0xff]
        %v616 = vld [vmem:[%s289 + $0x14] sm:$0xf]
        %v617 = vld [vmem:[#allocation2] sm:$0xff]
        %v618 = vld [vmem:[#allocation2 + $0x8] sm:$0xff]
        %v619 = vld [vmem:[#allocation2 + $0x10] sm:$0xff]
        %621 = vrot.lane.b32.xlu0 %v612, 96
        %v622 = vpop.permute.xlu0 %621
        %v627 = vunpack.c.l.b16 %v613
        %v628 = vunpack.c.h.b16 %v613
        %v629 = vunpack.c.l.b16 %v614
        %v630 = vunpack.c.l.b16 %v615
        %v631 = vunpack.c.h.b16 %v615
        %v632 = vunpack.c.l.b16 %v616
        %v633 = vpack.c.b16 %v630, %v627
        %v634 = vpack.c.b16 %v631, %v628
        %v635 = vpack.c.b16 %v632, %v629
        %636 = vrot.lane.b32.xlu0 %v633, 126
        %v637 = vpop.permute.xlu0 %636
        %638 = vrot.lane.b32.xlu0 %v634, 126
        %v639 = vpop.permute.xlu0 %638
        %640 = vrot.lane.b32.xlu0 %v635, 126
        %v641 = vpop.permute.xlu0 %640
        %vm642 = vcmask 1031168
        %v643 = vsel %vm642, %v637, %v639
        %v644 = vsel %vm642, %v639, %v641
        %v649 = vsel %vm375, %v622, 0
        %651 = vmatprep.subr.bf16.mxu0 0
        %652 = vmatpush1.bf16.msra.mxu0 0
        %653 = vmatprep.subr.bf16.mxu0 0
        %654 = vmatpush1.bf16.msra.mxu0 0
        %655 = vmatprep.subr.bf16.mxu0 0
        %656 = vmatpush1.bf16.msra.mxu0 0
        %657 = vmatprep.subr.bf16.mxu0 0
        %658 = vmatpush1.bf16.msra.mxu0 0
        %659 = vmatprep.subr.bf16.mxu0 0
        %660 = vmatpush1.bf16.msra.mxu0 0
        %661 = vmatprep.subr.bf16.mxu0 0
        %662 = vmatpush1.bf16.msra.mxu0 0
        %663 = vmatprep.subr.bf16.mxu0 0
        %664 = vmatpush1.bf16.msra.mxu0 0
        %665 = vmatprep.subr.bf16.mxu0 %v644
        %666 = vmatpush1.bf16.msra.mxu0 %v643
        %667 = vmatprep.subr.bf16.mxu0 0
        %668 = vmatpush2.bf16.msra.mxu0 0
        %669 = vmatprep.subr.bf16.mxu0 0
        %670 = vmatpush2.bf16.msra.mxu0 0
        %671 = vmatprep.subr.bf16.mxu0 0
        %672 = vmatpush2.bf16.msra.mxu0 0
        %673 = vmatprep.subr.bf16.mxu0 0
        %674 = vmatpush2.bf16.msra.mxu0 0
        %675 = vmatprep.subr.bf16.mxu0 0
        %676 = vmatpush2.bf16.msra.mxu0 0
        %677 = vmatprep.subr.bf16.mxu0 0
        %678 = vmatpush2.bf16.msra.mxu0 0
        %679 = vmatprep.subr.bf16.mxu0 0
        %680 = vmatpush2.bf16.msra.mxu0 0
        %681 = vmatprep.subr.bf16.mxu0 0
        %682 = vmatpush2.bf16.msra.mxu0 0
        %683 = vmatprep.mubr.bf16.mxu0 0
        %684 = vmatmul.mubr.bf16.gmra.mxu0 %v649
        %v685 = vpop.f32.mrf.mxu0
        %v686 = vadd.f32 0.0, %v685
        %v687 = vpop.f32.mrf.mxu0
        %v688 = vadd.f32 0.0, %v687
        %v689 = vpop.f32.mrf.mxu0
        %v690 = vpop.f32.mrf.mxu0
        %691 = vdwg.mxu0
        %692 = vmatprep.subr.bf16.mxu0 0
        %693 = vmatpush1.bf16.msra.mxu0 0
        %694 = vmatprep.subr.bf16.mxu0 0
        %695 = vmatpush1.bf16.msra.mxu0 0
        %696 = vmatprep.subr.bf16.mxu0 0
        %697 = vmatpush1.bf16.msra.mxu0 0
        %698 = vmatprep.subr.bf16.mxu0 0
        %699 = vmatpush1.bf16.msra.mxu0 0
        %700 = vmatprep.subr.bf16.mxu0 0
        %701 = vmatpush1.bf16.msra.mxu0 0
        %702 = vmatprep.subr.bf16.mxu0 0
        %703 = vmatpush1.bf16.msra.mxu0 0
        %704 = vmatprep.subr.bf16.mxu0 0
        %705 = vmatpush1.bf16.msra.mxu0 0
        %706 = vmatprep.subr.bf16.mxu0 0
        %707 = vmatpush1.bf16.msra.mxu0 %v641
        %708 = vmatprep.subr.bf16.mxu0 0
        %709 = vmatpush2.bf16.msra.mxu0 0
        %710 = vmatprep.subr.bf16.mxu0 0
        %711 = vmatpush2.bf16.msra.mxu0 0
        %712 = vmatprep.subr.bf16.mxu0 0
        %713 = vmatpush2.bf16.msra.mxu0 0
        %714 = vmatprep.subr.bf16.mxu0 0
        %715 = vmatpush2.bf16.msra.mxu0 0
        %716 = vmatprep.subr.bf16.mxu0 0
        %717 = vmatpush2.bf16.msra.mxu0 0
        %718 = vmatprep.subr.bf16.mxu0 0
        %719 = vmatpush2.bf16.msra.mxu0 0
        %720 = vmatprep.subr.bf16.mxu0 0
        %721 = vmatpush2.bf16.msra.mxu0 0
        %722 = vmatprep.subr.bf16.mxu0 0
        %723 = vmatpush2.bf16.msra.mxu0 0
        %724 = vmatprep.mubr.bf16.mxu0 0
        %725 = vmatmul.mubr.bf16.gmra.mxu0 %v649
        %v726 = vpop.f32.mrf.mxu0
        %v727 = vadd.f32 0.0, %v726
        %v728 = vpop.f32.mrf.mxu0
        %v729 = vpop.f32.mrf.mxu0
        %v730 = vpop.f32.mrf.mxu0
        %731 = vdwg.mxu0
        %v732 = vadd.f32 %v617, %v686
        %v733 = vadd.f32 %v618, %v688
        %v734 = vadd.f32 %v619, %v727
        %735 = vst [vmem:[#allocation2] sm:$0xff] %v732
        %736 = vst [vmem:[#allocation2 + $0x8] sm:$0xff] %v733
        %737 = vst.msk [vmem:[#allocation2 + $0x10] sm:$0xff] %vm346, %v734
        %v738 = vld [vmem:[#allocation6] sm:$0xff]
        %739 = vrot.lane.b32.xlu0 %v342, 48
        %v740 = vpop.permute.xlu0 %739
        %v742 = vmul.f32 %v738, %v740
        %743 = vrot.lane.b32.xlu0 %v343, 48
        %v744 = vpop.permute.xlu0 %743
        %v746 = vadd.f32 %v742, %v744
        %v747 = vpack.c.bf16 %v746, %v746
        %v748 = vld [vmem:[%s289] sm:$0xff]
        %v749 = vld [vmem:[%s289 + $0x8] sm:$0xf]
        %v750 = vld [vmem:[%s289 + $0xc] sm:$0xff]
        %v751 = vld [vmem:[%s289 + $0x14] sm:$0xf]
        %v752 = vld [vmem:[#allocation2] sm:$0xff]
        %v753 = vld [vmem:[#allocation2 + $0x8] sm:$0xff]
        %v754 = vld [vmem:[#allocation2 + $0x10] sm:$0xff]
        %756 = vrot.lane.b32.xlu0 %v747, 80
        %v757 = vpop.permute.xlu0 %756
        %v762 = vunpack.c.l.b16 %v748
        %v763 = vunpack.c.h.b16 %v748
        %v764 = vunpack.c.l.b16 %v749
        %v765 = vunpack.c.l.b16 %v750
        %v766 = vunpack.c.h.b16 %v750
        %v767 = vunpack.c.l.b16 %v751
        %v768 = vpack.c.b16 %v765, %v762
        %v769 = vpack.c.b16 %v766, %v763
        %v770 = vpack.c.b16 %v767, %v764
        %771 = vrot.lane.b32.xlu0 %v768, 110
        %v772 = vpop.permute.xlu0 %771
        %773 = vrot.lane.b32.xlu0 %v769, 110
        %v774 = vpop.permute.xlu0 %773
        %775 = vrot.lane.b32.xlu0 %v770, 110
        %v776 = vpop.permute.xlu0 %775
        %vm777 = vcmask 900096
        %v778 = vsel %vm777, %v772, %v774
        %v779 = vsel %vm777, %v774, %v776
        %v784 = vsel %vm375, %v757, 0
        %786 = vmatprep.subr.bf16.mxu0 0
        %787 = vmatpush1.bf16.msra.mxu0 0
        %788 = vmatprep.subr.bf16.mxu0 0
        %789 = vmatpush1.bf16.msra.mxu0 0
        %790 = vmatprep.subr.bf16.mxu0 0
        %791 = vmatpush1.bf16.msra.mxu0 0
        %792 = vmatprep.subr.bf16.mxu0 0
        %793 = vmatpush1.bf16.msra.mxu0 0
        %794 = vmatprep.subr.bf16.mxu0 0
        %795 = vmatpush1.bf16.msra.mxu0 0
        %796 = vmatprep.subr.bf16.mxu0 0
        %797 = vmatpush1.bf16.msra.mxu0 0
        %798 = vmatprep.subr.bf16.mxu0 0
        %799 = vmatpush1.bf16.msra.mxu0 0
        %800 = vmatprep.subr.bf16.mxu0 %v779
        %801 = vmatpush1.bf16.msra.mxu0 %v778
        %802 = vmatprep.subr.bf16.mxu0 0
        %803 = vmatpush2.bf16.msra.mxu0 0
        %804 = vmatprep.subr.bf16.mxu0 0
        %805 = vmatpush2.bf16.msra.mxu0 0
        %806 = vmatprep.subr.bf16.mxu0 0
        %807 = vmatpush2.bf16.msra.mxu0 0
        %808 = vmatprep.subr.bf16.mxu0 0
        %809 = vmatpush2.bf16.msra.mxu0 0
        %810 = vmatprep.subr.bf16.mxu0 0
        %811 = vmatpush2.bf16.msra.mxu0 0
        %812 = vmatprep.subr.bf16.mxu0 0
        %813 = vmatpush2.bf16.msra.mxu0 0
        %814 = vmatprep.subr.bf16.mxu0 0
        %815 = vmatpush2.bf16.msra.mxu0 0
        %816 = vmatprep.subr.bf16.mxu0 0
        %817 = vmatpush2.bf16.msra.mxu0 0
        %818 = vmatprep.mubr.bf16.mxu0 0
        %819 = vmatmul.mubr.bf16.gmra.mxu0 %v784
        %v820 = vpop.f32.mrf.mxu0
        %v821 = vadd.f32 0.0, %v820
        %v822 = vpop.f32.mrf.mxu0
        %v823 = vadd.f32 0.0, %v822
        %v824 = vpop.f32.mrf.mxu0
        %v825 = vpop.f32.mrf.mxu0
        %826 = vdwg.mxu0
        %827 = vmatprep.subr.bf16.mxu0 0
        %828 = vmatpush1.bf16.msra.mxu0 0
        %829 = vmatprep.subr.bf16.mxu0 0
        %830 = vmatpush1.bf16.msra.mxu0 0
        %831 = vmatprep.subr.bf16.mxu0 0
        %832 = vmatpush1.bf16.msra.mxu0 0
        %833 = vmatprep.subr.bf16.mxu0 0
        %834 = vmatpush1.bf16.msra.mxu0 0
        %835 = vmatprep.subr.bf16.mxu0 0
        %836 = vmatpush1.bf16.msra.mxu0 0
        %837 = vmatprep.subr.bf16.mxu0 0
        %838 = vmatpush1.bf16.msra.mxu0 0
        %839 = vmatprep.subr.bf16.mxu0 0
        %840 = vmatpush1.bf16.msra.mxu0 0
        %841 = vmatprep.subr.bf16.mxu0 0
        %842 = vmatpush1.bf16.msra.mxu0 %v776
        %843 = vmatprep.subr.bf16.mxu0 0
        %844 = vmatpush2.bf16.msra.mxu0 0
        %845 = vmatprep.subr.bf16.mxu0 0
        %846 = vmatpush2.bf16.msra.mxu0 0
        %847 = vmatprep.subr.bf16.mxu0 0
        %848 = vmatpush2.bf16.msra.mxu0 0
        %849 = vmatprep.subr.bf16.mxu0 0
        %850 = vmatpush2.bf16.msra.mxu0 0
        %851 = vmatprep.subr.bf16.mxu0 0
        %852 = vmatpush2.bf16.msra.mxu0 0
        %853 = vmatprep.subr.bf16.mxu0 0
        %854 = vmatpush2.bf16.msra.mxu0 0
        %855 = vmatprep.subr.bf16.mxu0 0
        %856 = vmatpush2.bf16.msra.mxu0 0
        %857 = vmatprep.subr.bf16.mxu0 0
        %858 = vmatpush2.bf16.msra.mxu0 0
        %859 = vmatprep.mubr.bf16.mxu0 0
        %860 = vmatmul.mubr.bf16.gmra.mxu0 %v784
        %v861 = vpop.f32.mrf.mxu0
        %v862 = vadd.f32 0.0, %v861
        %v863 = vpop.f32.mrf.mxu0
        %v864 = vpop.f32.mrf.mxu0
        %v865 = vpop.f32.mrf.mxu0
        %866 = vdwg.mxu0
        %v867 = vadd.f32 %v752, %v821
        %v868 = vadd.f32 %v753, %v823
        %v869 = vadd.f32 %v754, %v862
        %870 = vst [vmem:[#allocation2] sm:$0xff] %v867
        %871 = vst [vmem:[#allocation2 + $0x8] sm:$0xff] %v868
        %872 = vst.msk [vmem:[#allocation2 + $0x10] sm:$0xff] %vm346, %v869
        %v873 = vld [vmem:[#allocation6] sm:$0xff]
        %874 = vrot.lane.b32.xlu0 %v342, 64
        %v875 = vpop.permute.xlu0 %874
        %v877 = vmul.f32 %v873, %v875
        %878 = vrot.lane.b32.xlu0 %v343, 64
        %v879 = vpop.permute.xlu0 %878
        %v881 = vadd.f32 %v877, %v879
        %v882 = vpack.c.bf16 %v881, %v881
        %v883 = vld [vmem:[%s289] sm:$0xff]
        %v884 = vld [vmem:[%s289 + $0x8] sm:$0xf]
        %v885 = vld [vmem:[%s289 + $0xc] sm:$0xff]
        %v886 = vld [vmem:[%s289 + $0x14] sm:$0xf]
        %v887 = vld [vmem:[#allocation2] sm:$0xff]
        %v888 = vld [vmem:[#allocation2 + $0x8] sm:$0xff]
        %v889 = vld [vmem:[#allocation2 + $0x10] sm:$0xff]
        %891 = vrot.lane.b32.xlu0 %v882, 64
        %v892 = vpop.permute.xlu0 %891
        %v897 = vunpack.c.l.b16 %v883
        %v898 = vunpack.c.h.b16 %v883
        %v899 = vunpack.c.l.b16 %v884
        %v900 = vunpack.c.l.b16 %v885
        %v901 = vunpack.c.h.b16 %v885
        %v902 = vunpack.c.l.b16 %v886
        %v903 = vpack.c.b16 %v900, %v897
        %v904 = vpack.c.b16 %v901, %v898
        %v905 = vpack.c.b16 %v902, %v899
        %906 = vrot.lane.b32.xlu0 %v903, 109
        %v907 = vpop.permute.xlu0 %906
        %908 = vrot.lane.b32.xlu0 %v904, 109
        %v909 = vpop.permute.xlu0 %908
        %910 = vrot.lane.b32.xlu0 %v905, 109
        %v911 = vpop.permute.xlu0 %910
        %vm912 = vcmask 891904
        %v913 = vsel %vm912, %v907, %v909
        %v914 = vsel %vm912, %v909, %v911
        %v919 = vsel %vm375, %v892, 0
        %921 = vmatprep.subr.bf16.mxu0 0
        %922 = vmatpush1.bf16.msra.mxu0 0
        %923 = vmatprep.subr.bf16.mxu0 0
        %924 = vmatpush1.bf16.msra.mxu0 0
        %925 = vmatprep.subr.bf16.mxu0 0
        %926 = vmatpush1.bf16.msra.mxu0 0
        %927 = vmatprep.subr.bf16.mxu0 0
        %928 = vmatpush1.bf16.msra.mxu0 0
        %929 = vmatprep.subr.bf16.mxu0 0
        %930 = vmatpush1.bf16.msra.mxu0 0
        %931 = vmatprep.subr.bf16.mxu0 0
        %932 = vmatpush1.bf16.msra.mxu0 0
        %933 = vmatprep.subr.bf16.mxu0 0
        %934 = vmatpush1.bf16.msra.mxu0 0
        %935 = vmatprep.subr.bf16.mxu0 %v914
        %936 = vmatpush1.bf16.msra.mxu0 %v913
        %937 = vmatprep.subr.bf16.mxu0 0
        %938 = vmatpush2.bf16.msra.mxu0 0
        %939 = vmatprep.subr.bf16.mxu0 0
        %940 = vmatpush2.bf16.msra.mxu0 0
        %941 = vmatprep.subr.bf16.mxu0 0
        %942 = vmatpush2.bf16.msra.mxu0 0
        %943 = vmatprep.subr.bf16.mxu0 0
        %944 = vmatpush2.bf16.msra.mxu0 0
        %945 = vmatprep.subr.bf16.mxu0 0
        %946 = vmatpush2.bf16.msra.mxu0 0
        %947 = vmatprep.subr.bf16.mxu0 0
        %948 = vmatpush2.bf16.msra.mxu0 0
        %949 = vmatprep.subr.bf16.mxu0 0
        %950 = vmatpush2.bf16.msra.mxu0 0
        %951 = vmatprep.subr.bf16.mxu0 0
        %952 = vmatpush2.bf16.msra.mxu0 0
        %953 = vmatprep.mubr.bf16.mxu0 0
        %954 = vmatmul.mubr.bf16.gmra.mxu0 %v919
        %v955 = vpop.f32.mrf.mxu0
        %v956 = vadd.f32 0.0, %v955
        %v957 = vpop.f32.mrf.mxu0
        %v958 = vadd.f32 0.0, %v957
        %v959 = vpop.f32.mrf.mxu0
        %v960 = vpop.f32.mrf.mxu0
        %961 = vdwg.mxu0
        %962 = vmatprep.subr.bf16.mxu0 0
        %963 = vmatpush1.bf16.msra.mxu0 0
        %964 = vmatprep.subr.bf16.mxu0 0
        %965 = vmatpush1.bf16.msra.mxu0 0
        %966 = vmatprep.subr.bf16.mxu0 0
        %967 = vmatpush1.bf16.msra.mxu0 0
        %968 = vmatprep.subr.bf16.mxu0 0
        %969 = vmatpush1.bf16.msra.mxu0 0
        %970 = vmatprep.subr.bf16.mxu0 0
        %971 = vmatpush1.bf16.msra.mxu0 0
        %972 = vmatprep.subr.bf16.mxu0 0
        %973 = vmatpush1.bf16.msra.mxu0 0
        %974 = vmatprep.subr.bf16.mxu0 0
        %975 = vmatpush1.bf16.msra.mxu0 0
        %976 = vmatprep.subr.bf16.mxu0 0
        %977 = vmatpush1.bf16.msra.mxu0 %v911
        %978 = vmatprep.subr.bf16.mxu0 0
        %979 = vmatpush2.bf16.msra.mxu0 0
        %980 = vmatprep.subr.bf16.mxu0 0
        %981 = vmatpush2.bf16.msra.mxu0 0
        %982 = vmatprep.subr.bf16.mxu0 0
        %983 = vmatpush2.bf16.msra.mxu0 0
        %984 = vmatprep.subr.bf16.mxu0 0
        %985 = vmatpush2.bf16.msra.mxu0 0
        %986 = vmatprep.subr.bf16.mxu0 0
        %987 = vmatpush2.bf16.msra.mxu0 0
        %988 = vmatprep.subr.bf16.mxu0 0
        %989 = vmatpush2.bf16.msra.mxu0 0
        %990 = vmatprep.subr.bf16.mxu0 0
        %991 = vmatpush2.bf16.msra.mxu0 0
        %992 = vmatprep.subr.bf16.mxu0 0
        %993 = vmatpush2.bf16.msra.mxu0 0
        %994 = vmatprep.mubr.bf16.mxu0 0
        %995 = vmatmul.mubr.bf16.gmra.mxu0 %v919
        %v996 = vpop.f32.mrf.mxu0
        %v997 = vadd.f32 0.0, %v996
        %v998 = vpop.f32.mrf.mxu0
        %v999 = vpop.f32.mrf.mxu0
        %v1000 = vpop.f32.mrf.mxu0
        %1001 = vdwg.mxu0
        %v1002 = vadd.f32 %v887, %v956
        %v1003 = vadd.f32 %v888, %v958
        %v1004 = vadd.f32 %v889, %v997
        %1005 = vst [vmem:[#allocation2] sm:$0xff] %v1002
        %1006 = vst [vmem:[#allocation2 + $0x8] sm:$0xff] %v1003
        %1007 = vst.msk [vmem:[#allocation2 + $0x10] sm:$0xff] %vm346, %v1004
        %v1008 = vld [vmem:[#allocation6] sm:$0xff]
        %1009 = vrot.lane.b32.xlu0 %v342, 80
        %v1010 = vpop.permute.xlu0 %1009
        %v1012 = vmul.f32 %v1008, %v1010
        %1013 = vrot.lane.b32.xlu0 %v343, 80
        %v1014 = vpop.permute.xlu0 %1013
        %v1016 = vadd.f32 %v1012, %v1014
        %v1017 = vpack.c.bf16 %v1016, %v1016
        %v1018 = vld [vmem:[%s289] sm:$0xff]
        %v1019 = vld [vmem:[%s289 + $0x8] sm:$0xf]
        %v1020 = vld [vmem:[%s289 + $0xc] sm:$0xff]
        %v1021 = vld [vmem:[%s289 + $0x14] sm:$0xf]
        %v1022 = vld [vmem:[#allocation2] sm:$0xff]
        %v1023 = vld [vmem:[#allocation2 + $0x8] sm:$0xff]
        %v1024 = vld [vmem:[#allocation2 + $0x10] sm:$0xff]
        %1026 = vrot.lane.b32.xlu0 %v1017, 48
        %v1027 = vpop.permute.xlu0 %1026
        %v1032 = vunpack.c.l.b16 %v1018
        %v1033 = vunpack.c.h.b16 %v1018
        %v1034 = vunpack.c.l.b16 %v1019
        %v1035 = vunpack.c.l.b16 %v1020
        %v1036 = vunpack.c.h.b16 %v1020
        %v1037 = vunpack.c.l.b16 %v1021
        %v1038 = vpack.c.b16 %v1035, %v1032
        %v1039 = vpack.c.b16 %v1036, %v1033
        %v1040 = vpack.c.b16 %v1037, %v1034
        %1041 = vrot.lane.b32.xlu0 %v1038, 108
        %v1042 = vpop.permute.xlu0 %1041
        %1043 = vrot.lane.b32.xlu0 %v1039, 108
        %v1044 = vpop.permute.xlu0 %1043
        %1045 = vrot.lane.b32.xlu0 %v1040, 108
        %v1046 = vpop.permute.xlu0 %1045
        %vm1047 = vcmask 883712
        %v1048 = vsel %vm1047, %v1042, %v1044
        %v1049 = vsel %vm1047, %v1044, %v1046
        %v1054 = vsel %vm375, %v1027, 0
        %1056 = vmatprep.subr.bf16.mxu0 0
        %1057 = vmatpush1.bf16.msra.mxu0 0
        %1058 = vmatprep.subr.bf16.mxu0 0
        %1059 = vmatpush1.bf16.msra.mxu0 0
        %1060 = vmatprep.subr.bf16.mxu0 0
        %1061 = vmatpush1.bf16.msra.mxu0 0
        %1062 = vmatprep.subr.bf16.mxu0 0
        %1063 = vmatpush1.bf16.msra.mxu0 0
        %1064 = vmatprep.subr.bf16.mxu0 0
        %1065 = vmatpush1.bf16.msra.mxu0 0
        %1066 = vmatprep.subr.bf16.mxu0 0
        %1067 = vmatpush1.bf16.msra.mxu0 0
        %1068 = vmatprep.subr.bf16.mxu0 0
        %1069 = vmatpush1.bf16.msra.mxu0 0
        %1070 = vmatprep.subr.bf16.mxu0 %v1049
        %1071 = vmatpush1.bf16.msra.mxu0 %v1048
        %1072 = vmatprep.subr.bf16.mxu0 0
        %1073 = vmatpush2.bf16.msra.mxu0 0
        %1074 = vmatprep.subr.bf16.mxu0 0
        %1075 = vmatpush2.bf16.msra.mxu0 0
        %1076 = vmatprep.subr.bf16.mxu0 0
        %1077 = vmatpush2.bf16.msra.mxu0 0
        %1078 = vmatprep.subr.bf16.mxu0 0
        %1079 = vmatpush2.bf16.msra.mxu0 0
        %1080 = vmatprep.subr.bf16.mxu0 0
        %1081 = vmatpush2.bf16.msra.mxu0 0
        %1082 = vmatprep.subr.bf16.mxu0 0
        %1083 = vmatpush2.bf16.msra.mxu0 0
        %1084 = vmatprep.subr.bf16.mxu0 0
        %1085 = vmatpush2.bf16.msra.mxu0 0
        %1086 = vmatprep.subr.bf16.mxu0 0
        %1087 = vmatpush2.bf16.msra.mxu0 0
        %1088 = vmatprep.mubr.bf16.mxu0 0
        %1089 = vmatmul.mubr.bf16.gmra.mxu0 %v1054
        %v1090 = vpop.f32.mrf.mxu0
        %v1091 = vadd.f32 0.0, %v1090
        %v1092 = vpop.f32.mrf.mxu0
        %v1093 = vadd.f32 0.0, %v1092
        %v1094 = vpop.f32.mrf.mxu0
        %v1095 = vpop.f32.mrf.mxu0
        %1096 = vdwg.mxu0
        %1097 = vmatprep.subr.bf16.mxu0 0
        %1098 = vmatpush1.bf16.msra.mxu0 0
        %1099 = vmatprep.subr.bf16.mxu0 0
        %1100 = vmatpush1.bf16.msra.mxu0 0
        %1101 = vmatprep.subr.bf16.mxu0 0
        %1102 = vmatpush1.bf16.msra.mxu0 0
        %1103 = vmatprep.subr.bf16.mxu0 0
        %1104 = vmatpush1.bf16.msra.mxu0 0
        %1105 = vmatprep.subr.bf16.mxu0 0
        %1106 = vmatpush1.bf16.msra.mxu0 0
        %1107 = vmatprep.subr.bf16.mxu0 0
        %1108 = vmatpush1.bf16.msra.mxu0 0
        %1109 = vmatprep.subr.bf16.mxu0 0
        %1110 = vmatpush1.bf16.msra.mxu0 0
        %1111 = vmatprep.subr.bf16.mxu0 0
        %1112 = vmatpush1.bf16.msra.mxu0 %v1046
        %1113 = vmatprep.subr.bf16.mxu0 0
        %1114 = vmatpush2.bf16.msra.mxu0 0
        %1115 = vmatprep.subr.bf16.mxu0 0
        %1116 = vmatpush2.bf16.msra.mxu0 0
        %1117 = vmatprep.subr.bf16.mxu0 0
        %1118 = vmatpush2.bf16.msra.mxu0 0
        %1119 = vmatprep.subr.bf16.mxu0 0
        %1120 = vmatpush2.bf16.msra.mxu0 0
        %1121 = vmatprep.subr.bf16.mxu0 0
        %1122 = vmatpush2.bf16.msra.mxu0 0
        %1123 = vmatprep.subr.bf16.mxu0 0
        %1124 = vmatpush2.bf16.msra.mxu0 0
        %1125 = vmatprep.subr.bf16.mxu0 0
        %1126 = vmatpush2.bf16.msra.mxu0 0
        %1127 = vmatprep.subr.bf16.mxu0 0
        %1128 = vmatpush2.bf16.msra.mxu0 0
        %1129 = vmatprep.mubr.bf16.mxu0 0
        %1130 = vmatmul.mubr.bf16.gmra.mxu0 %v1054
        %v1131 = vpop.f32.mrf.mxu0
        %v1132 = vadd.f32 0.0, %v1131
        %v1133 = vpop.f32.mrf.mxu0
        %v1134 = vpop.f32.mrf.mxu0
        %v1135 = vpop.f32.mrf.mxu0
        %1136 = vdwg.mxu0
        %v1137 = vadd.f32 %v1022, %v1091
        %v1138 = vadd.f32 %v1023, %v1093
        %v1139 = vadd.f32 %v1024, %v1132
        %1140 = vst [vmem:[#allocation2] sm:$0xff] %v1137
        %1141 = vst [vmem:[#allocation2 + $0x8] sm:$0xff] %v1138
        %1142 = vst.msk [vmem:[#allocation2 + $0x10] sm:$0xff] %vm346, %v1139
        %v1143 = vld [vmem:[#allocation6] sm:$0xff]
        %1144 = vrot.lane.b32.xlu0 %v342, 96
        %v1145 = vpop.permute.xlu0 %1144
        %v1147 = vmul.f32 %v1143, %v1145
        %1148 = vrot.lane.b32.xlu0 %v343, 96
        %v1149 = vpop.permute.xlu0 %1148
        %v1151 = vadd.f32 %v1147, %v1149
        %v1152 = vpack.c.bf16 %v1151, %v1151
        %v1153 = vld [vmem:[%s289] sm:$0xff]
        %v1154 = vld [vmem:[%s289 + $0x8] sm:$0xf]
        %v1155 = vld [vmem:[%s289 + $0xc] sm:$0xff]
        %v1156 = vld [vmem:[%s289 + $0x14] sm:$0xf]
        %v1157 = vld [vmem:[#allocation2] sm:$0xff]
        %v1158 = vld [vmem:[#allocation2 + $0x8] sm:$0xff]
        %v1159 = vld [vmem:[#allocation2 + $0x10] sm:$0xff]
        %1161 = vrot.lane.b32.xlu0 %v1152, 32
        %v1162 = vpop.permute.xlu0 %1161
        %v1167 = vunpack.c.l.b16 %v1153
        %v1168 = vunpack.c.h.b16 %v1153
        %v1169 = vunpack.c.l.b16 %v1154
        %v1170 = vunpack.c.l.b16 %v1155
        %v1171 = vunpack.c.h.b16 %v1155
        %v1172 = vunpack.c.l.b16 %v1156
        %v1173 = vpack.c.b16 %v1170, %v1167
        %v1174 = vpack.c.b16 %v1171, %v1168
        %v1175 = vpack.c.b16 %v1172, %v1169
        %1176 = vrot.lane.b32.xlu0 %v1173, 92
        %v1177 = vpop.permute.xlu0 %1176
        %1178 = vrot.lane.b32.xlu0 %v1174, 92
        %v1179 = vpop.permute.xlu0 %1178
        %1180 = vrot.lane.b32.xlu0 %v1175, 92
        %v1181 = vpop.permute.xlu0 %1180
        %vm1182 = vcmask 752640
        %v1183 = vsel %vm1182, %v1177, %v1179
        %v1184 = vsel %vm1182, %v1179, %v1181
        %v1189 = vsel %vm375, %v1162, 0
        %1191 = vmatprep.subr.bf16.mxu0 0
        %1192 = vmatpush1.bf16.msra.mxu0 0
        %1193 = vmatprep.subr.bf16.mxu0 0
        %1194 = vmatpush1.bf16.msra.mxu0 0
        %1195 = vmatprep.subr.bf16.mxu0 0
        %1196 = vmatpush1.bf16.msra.mxu0 0
        %1197 = vmatprep.subr.bf16.mxu0 0
        %1198 = vmatpush1.bf16.msra.mxu0 0
        %1199 = vmatprep.subr.bf16.mxu0 0
        %1200 = vmatpush1.bf16.msra.mxu0 0
        %1201 = vmatprep.subr.bf16.mxu0 0
        %1202 = vmatpush1.bf16.msra.mxu0 0
        %1203 = vmatprep.subr.bf16.mxu0 0
        %1204 = vmatpush1.bf16.msra.mxu0 0
        %1205 = vmatprep.subr.bf16.mxu0 %v1184
        %1206 = vmatpush1.bf16.msra.mxu0 %v1183
        %1207 = vmatprep.subr.bf16.mxu0 0
        %1208 = vmatpush2.bf16.msra.mxu0 0
        %1209 = vmatprep.subr.bf16.mxu0 0
        %1210 = vmatpush2.bf16.msra.mxu0 0
        %1211 = vmatprep.subr.bf16.mxu0 0
        %1212 = vmatpush2.bf16.msra.mxu0 0
        %1213 = vmatprep.subr.bf16.mxu0 0
        %1214 = vmatpush2.bf16.msra.mxu0 0
        %1215 = vmatprep.subr.bf16.mxu0 0
        %1216 = vmatpush2.bf16.msra.mxu0 0
        %1217 = vmatprep.subr.bf16.mxu0 0
        %1218 = vmatpush2.bf16.msra.mxu0 0
        %1219 = vmatprep.subr.bf16.mxu0 0
        %1220 = vmatpush2.bf16.msra.mxu0 0
        %1221 = vmatprep.subr.bf16.mxu0 0
        %1222 = vmatpush2.bf16.msra.mxu0 0
        %1223 = vmatprep.mubr.bf16.mxu0 0
        %1224 = vmatmul.mubr.bf16.gmra.mxu0 %v1189
        %v1225 = vpop.f32.mrf.mxu0
        %v1226 = vadd.f32 0.0, %v1225
        %v1227 = vpop.f32.mrf.mxu0
        %v1228 = vadd.f32 0.0, %v1227
        %v1229 = vpop.f32.mrf.mxu0
        %v1230 = vpop.f32.mrf.mxu0
        %1231 = vdwg.mxu0
        %1232 = vmatprep.subr.bf16.mxu0 0
        %1233 = vmatpush1.bf16.msra.mxu0 0
        %1234 = vmatprep.subr.bf16.mxu0 0
        %1235 = vmatpush1.bf16.msra.mxu0 0
        %1236 = vmatprep.subr.bf16.mxu0 0
        %1237 = vmatpush1.bf16.msra.mxu0 0
        %1238 = vmatprep.subr.bf16.mxu0 0
        %1239 = vmatpush1.bf16.msra.mxu0 0
        %1240 = vmatprep.subr.bf16.mxu0 0
        %1241 = vmatpush1.bf16.msra.mxu0 0
        %1242 = vmatprep.subr.bf16.mxu0 0
        %1243 = vmatpush1.bf16.msra.mxu0 0
        %1244 = vmatprep.subr.bf16.mxu0 0
        %1245 = vmatpush1.bf16.msra.mxu0 0
        %1246 = vmatprep.subr.bf16.mxu0 0
        %1247 = vmatpush1.bf16.msra.mxu0 %v1181
        %1248 = vmatprep.subr.bf16.mxu0 0
        %1249 = vmatpush2.bf16.msra.mxu0 0
        %1250 = vmatprep.subr.bf16.mxu0 0
        %1251 = vmatpush2.bf16.msra.mxu0 0
        %1252 = vmatprep.subr.bf16.mxu0 0
        %1253 = vmatpush2.bf16.msra.mxu0 0
        %1254 = vmatprep.subr.bf16.mxu0 0
        %1255 = vmatpush2.bf16.msra.mxu0 0
        %1256 = vmatprep.subr.bf16.mxu0 0
        %1257 = vmatpush2.bf16.msra.mxu0 0
        %1258 = vmatprep.subr.bf16.mxu0 0
        %1259 = vmatpush2.bf16.msra.mxu0 0
        %1260 = vmatprep.subr.bf16.mxu0 0
        %1261 = vmatpush2.bf16.msra.mxu0 0
        %1262 = vmatprep.subr.bf16.mxu0 0
        %1263 = vmatpush2.bf16.msra.mxu0 0
        %1264 = vmatprep.mubr.bf16.mxu0 0
        %1265 = vmatmul.mubr.bf16.gmra.mxu0 %v1189
        %v1266 = vpop.f32.mrf.mxu0
        %v1267 = vadd.f32 0.0, %v1266
        %v1268 = vpop.f32.mrf.mxu0
        %v1269 = vpop.f32.mrf.mxu0
        %v1270 = vpop.f32.mrf.mxu0
        %1271 = vdwg.mxu0
        %v1272 = vadd.f32 %v1157, %v1226
        %v1273 = vadd.f32 %v1158, %v1228
        %v1274 = vadd.f32 %v1159, %v1267
        %1275 = vst [vmem:[#allocation2] sm:$0xff] %v1272
        %1276 = vst [vmem:[#allocation2 + $0x8] sm:$0xff] %v1273
        %1277 = vst.msk [vmem:[#allocation2 + $0x10] sm:$0xff] %vm346, %v1274
        %v1278 = vld [vmem:[#allocation6] sm:$0xff]
        %1279 = vrot.lane.b32.xlu0 %v342, 112
        %v1280 = vpop.permute.xlu0 %1279
        %v1282 = vmul.f32 %v1278, %v1280
        %1283 = vrot.lane.b32.xlu0 %v343, 112
        %v1284 = vpop.permute.xlu0 %1283
        %v1286 = vadd.f32 %v1282, %v1284
        %v1287 = vpack.c.bf16 %v1286, %v1286
        %v1288 = vld [vmem:[%s289] sm:$0xff]
        %v1289 = vld [vmem:[%s289 + $0x8] sm:$0xf]
        %v1290 = vld [vmem:[%s289 + $0xc] sm:$0xff]
        %v1291 = vld [vmem:[%s289 + $0x14] sm:$0xf]
        %v1292 = vld [vmem:[#allocation2] sm:$0xff]
        %v1293 = vld [vmem:[#allocation2 + $0x8] sm:$0xff]
        %v1294 = vld [vmem:[#allocation2 + $0x10] sm:$0xff]
        %1296 = vrot.lane.b32.xlu0 %v1287, 16
        %v1297 = vpop.permute.xlu0 %1296
        %v1302 = vunpack.c.l.b16 %v1288
        %v1303 = vunpack.c.h.b16 %v1288
        %v1304 = vunpack.c.l.b16 %v1289
        %v1305 = vunpack.c.l.b16 %v1290
        %v1306 = vunpack.c.h.b16 %v1290
        %v1307 = vunpack.c.l.b16 %v1291
        %v1308 = vpack.c.b16 %v1305, %v1302
        %v1309 = vpack.c.b16 %v1306, %v1303
        %v1310 = vpack.c.b16 %v1307, %v1304
        %1311 = vrot.lane.b32.xlu0 %v1308, 91
        %v1312 = vpop.permute.xlu0 %1311
        %1313 = vrot.lane.b32.xlu0 %v1309, 91
        %v1314 = vpop.permute.xlu0 %1313
        %1315 = vrot.lane.b32.xlu0 %v1310, 91
        %v1316 = vpop.permute.xlu0 %1315
        %vm1317 = vcmask 744448
        %v1318 = vsel %vm1317, %v1312, %v1314
        %v1319 = vsel %vm1317, %v1314, %v1316
        %v1324 = vsel %vm375, %v1297, 0
        %1326 = vmatprep.subr.bf16.mxu0 0
        %1327 = vmatpush1.bf16.msra.mxu0 0
        %1328 = vmatprep.subr.bf16.mxu0 0
        %1329 = vmatpush1.bf16.msra.mxu0 0
        %1330 = vmatprep.subr.bf16.mxu0 0
        %1331 = vmatpush1.bf16.msra.mxu0 0
        %1332 = vmatprep.subr.bf16.mxu0 0
        %1333 = vmatpush1.bf16.msra.mxu0 0
        %1334 = vmatprep.subr.bf16.mxu0 0
        %1335 = vmatpush1.bf16.msra.mxu0 0
        %1336 = vmatprep.subr.bf16.mxu0 0
        %1337 = vmatpush1.bf16.msra.mxu0 0
        %1338 = vmatprep.subr.bf16.mxu0 0
        %1339 = vmatpush1.bf16.msra.mxu0 0
        %1340 = vmatprep.subr.bf16.mxu0 %v1319
        %1341 = vmatpush1.bf16.msra.mxu0 %v1318
        %1342 = vmatprep.subr.bf16.mxu0 0
        %1343 = vmatpush2.bf16.msra.mxu0 0
        %1344 = vmatprep.subr.bf16.mxu0 0
        %1345 = vmatpush2.bf16.msra.mxu0 0
        %1346 = vmatprep.subr.bf16.mxu0 0
        %1347 = vmatpush2.bf16.msra.mxu0 0
        %1348 = vmatprep.subr.bf16.mxu0 0
        %1349 = vmatpush2.bf16.msra.mxu0 0
        %1350 = vmatprep.subr.bf16.mxu0 0
        %1351 = vmatpush2.bf16.msra.mxu0 0
        %1352 = vmatprep.subr.bf16.mxu0 0
        %1353 = vmatpush2.bf16.msra.mxu0 0
        %1354 = vmatprep.subr.bf16.mxu0 0
        %1355 = vmatpush2.bf16.msra.mxu0 0
        %1356 = vmatprep.subr.bf16.mxu0 0
        %1357 = vmatpush2.bf16.msra.mxu0 0
        %1358 = vmatprep.mubr.bf16.mxu0 0
        %1359 = vmatmul.mubr.bf16.gmra.mxu0 %v1324
        %v1360 = vpop.f32.mrf.mxu0
        %v1361 = vadd.f32 0.0, %v1360
        %v1362 = vpop.f32.mrf.mxu0
        %v1363 = vadd.f32 0.0, %v1362
        %v1364 = vpop.f32.mrf.mxu0
        %v1365 = vpop.f32.mrf.mxu0
        %1366 = vdwg.mxu0
        %1367 = vmatprep.subr.bf16.mxu0 0
        %1368 = vmatpush1.bf16.msra.mxu0 0
        %1369 = vmatprep.subr.bf16.mxu0 0
        %1370 = vmatpush1.bf16.msra.mxu0 0
        %1371 = vmatprep.subr.bf16.mxu0 0
        %1372 = vmatpush1.bf16.msra.mxu0 0
        %1373 = vmatprep.subr.bf16.mxu0 0
        %1374 = vmatpush1.bf16.msra.mxu0 0
        %1375 = vmatprep.subr.bf16.mxu0 0
        %1376 = vmatpush1.bf16.msra.mxu0 0
        %1377 = vmatprep.subr.bf16.mxu0 0
        %1378 = vmatpush1.bf16.msra.mxu0 0
        %1379 = vmatprep.subr.bf16.mxu0 0
        %1380 = vmatpush1.bf16.msra.mxu0 0
        %1381 = vmatprep.subr.bf16.mxu0 0
        %1382 = vmatpush1.bf16.msra.mxu0 %v1316
        %1383 = vmatprep.subr.bf16.mxu0 0
        %1384 = vmatpush2.bf16.msra.mxu0 0
        %1385 = vmatprep.subr.bf16.mxu0 0
        %1386 = vmatpush2.bf16.msra.mxu0 0
        %1387 = vmatprep.subr.bf16.mxu0 0
        %1388 = vmatpush2.bf16.msra.mxu0 0
        %1389 = vmatprep.subr.bf16.mxu0 0
        %1390 = vmatpush2.bf16.msra.mxu0 0
        %1391 = vmatprep.subr.bf16.mxu0 0
        %1392 = vmatpush2.bf16.msra.mxu0 0
        %1393 = vmatprep.subr.bf16.mxu0 0
        %1394 = vmatpush2.bf16.msra.mxu0 0
        %1395 = vmatprep.subr.bf16.mxu0 0
        %1396 = vmatpush2.bf16.msra.mxu0 0
        %1397 = vmatprep.subr.bf16.mxu0 0
        %1398 = vmatpush2.bf16.msra.mxu0 0
        %1399 = vmatprep.mubr.bf16.mxu0 0
        %1400 = vmatmul.mubr.bf16.gmra.mxu0 %v1324
        %v1401 = vpop.f32.mrf.mxu0
        %v1402 = vadd.f32 0.0, %v1401
        %v1403 = vpop.f32.mrf.mxu0
        %v1404 = vpop.f32.mrf.mxu0
        %v1405 = vpop.f32.mrf.mxu0
        %1406 = vdwg.mxu0
        %v1407 = vadd.f32 %v1292, %v1361
        %v1408 = vadd.f32 %v1293, %v1363
        %v1409 = vadd.f32 %v1294, %v1402
        %1410 = vst [vmem:[#allocation2] sm:$0xff] %v1407
        %1411 = vst [vmem:[#allocation2 + $0x8] sm:$0xff] %v1408
        %1412 = vst.msk [vmem:[#allocation2 + $0x10] sm:$0xff] %vm346, %v1409
        %v1413 = vld [vmem:[#allocation6 + $0x8] sm:$0xff]
        %v1414 = vmul.f32 %v1413, %v342
        %v1415 = vadd.f32 %v1414, %v343
        %v1416 = vpack.c.bf16 %v1415, %v1415
        %v1417 = vld [vmem:[%s289] sm:$0xff]
        %v1418 = vld [vmem:[%s289 + $0x8] sm:$0xf]
        %v1419 = vld [vmem:[%s289 + $0xc] sm:$0xff]
        %v1420 = vld [vmem:[%s289 + $0x14] sm:$0xf]
        %v1421 = vld [vmem:[#allocation2] sm:$0xff]
        %v1422 = vld [vmem:[#allocation2 + $0x8] sm:$0xff]
        %v1423 = vld [vmem:[#allocation2 + $0x10] sm:$0xff]
        %v1428 = vunpack.c.l.b16 %v1417
        %v1429 = vunpack.c.h.b16 %v1417
        %v1430 = vunpack.c.l.b16 %v1418
        %v1431 = vunpack.c.l.b16 %v1419
        %v1432 = vunpack.c.h.b16 %v1419
        %v1433 = vunpack.c.l.b16 %v1420
        %v1434 = vpack.c.b16 %v1431, %v1428
        %v1435 = vpack.c.b16 %v1432, %v1429
        %v1436 = vpack.c.b16 %v1433, %v1430
        %1437 = vrot.lane.b32.xlu0 %v1434, 90
        %v1438 = vpop.permute.xlu0 %1437
        %1439 = vrot.lane.b32.xlu0 %v1435, 90
        %v1440 = vpop.permute.xlu0 %1439
        %1441 = vrot.lane.b32.xlu0 %v1436, 90
        %v1442 = vpop.permute.xlu0 %1441
        %vm1443 = vcmask 736256
        %v1444 = vsel %vm1443, %v1438, %v1440
        %v1445 = vsel %vm1443, %v1440, %v1442
        %v1450 = vsel %vm375, %v1416, 0
        %1452 = vmatprep.subr.bf16.mxu0 0
        %1453 = vmatpush1.bf16.msra.mxu0 0
        %1454 = vmatprep.subr.bf16.mxu0 0
        %1455 = vmatpush1.bf16.msra.mxu0 0
        %1456 = vmatprep.subr.bf16.mxu0 0
        %1457 = vmatpush1.bf16.msra.mxu0 0
        %1458 = vmatprep.subr.bf16.mxu0 0
        %1459 = vmatpush1.bf16.msra.mxu0 0
        %1460 = vmatprep.subr.bf16.mxu0 0
        %1461 = vmatpush1.bf16.msra.mxu0 0
        %1462 = vmatprep.subr.bf16.mxu0 0
        %1463 = vmatpush1.bf16.msra.mxu0 0
        %1464 = vmatprep.subr.bf16.mxu0 0
        %1465 = vmatpush1.bf16.msra.mxu0 0
        %1466 = vmatprep.subr.bf16.mxu0 %v1445
        %1467 = vmatpush1.bf16.msra.mxu0 %v1444
        %1468 = vmatprep.subr.bf16.mxu0 0
        %1469 = vmatpush2.bf16.msra.mxu0 0
        %1470 = vmatprep.subr.bf16.mxu0 0
        %1471 = vmatpush2.bf16.msra.mxu0 0
        %1472 = vmatprep.subr.bf16.mxu0 0
        %1473 = vmatpush2.bf16.msra.mxu0 0
        %1474 = vmatprep.subr.bf16.mxu0 0
        %1475 = vmatpush2.bf16.msra.mxu0 0
        %1476 = vmatprep.subr.bf16.mxu0 0
        %1477 = vmatpush2.bf16.msra.mxu0 0
        %1478 = vmatprep.subr.bf16.mxu0 0
        %1479 = vmatpush2.bf16.msra.mxu0 0
        %1480 = vmatprep.subr.bf16.mxu0 0
        %1481 = vmatpush2.bf16.msra.mxu0 0
        %1482 = vmatprep.subr.bf16.mxu0 0
        %1483 = vmatpush2.bf16.msra.mxu0 0
        %1484 = vmatprep.mubr.bf16.mxu0 0
        %1485 = vmatmul.mubr.bf16.gmra.mxu0 %v1450
        %v1486 = vpop.f32.mrf.mxu0
        %v1487 = vadd.f32 0.0, %v1486
        %v1488 = vpop.f32.mrf.mxu0
        %v1489 = vadd.f32 0.0, %v1488
        %v1490 = vpop.f32.mrf.mxu0
        %v1491 = vpop.f32.mrf.mxu0
        %1492 = vdwg.mxu0
        %1493 = vmatprep.subr.bf16.mxu0 0
        %1494 = vmatpush1.bf16.msra.mxu0 0
        %1495 = vmatprep.subr.bf16.mxu0 0
        %1496 = vmatpush1.bf16.msra.mxu0 0
        %1497 = vmatprep.subr.bf16.mxu0 0
        %1498 = vmatpush1.bf16.msra.mxu0 0
        %1499 = vmatprep.subr.bf16.mxu0 0
        %1500 = vmatpush1.bf16.msra.mxu0 0
        %1501 = vmatprep.subr.bf16.mxu0 0
        %1502 = vmatpush1.bf16.msra.mxu0 0
        %1503 = vmatprep.subr.bf16.mxu0 0
        %1504 = vmatpush1.bf16.msra.mxu0 0
        %1505 = vmatprep.subr.bf16.mxu0 0
        %1506 = vmatpush1.bf16.msra.mxu0 0
        %1507 = vmatprep.subr.bf16.mxu0 0
        %1508 = vmatpush1.bf16.msra.mxu0 %v1442
        %1509 = vmatprep.subr.bf16.mxu0 0
        %1510 = vmatpush2.bf16.msra.mxu0 0
        %1511 = vmatprep.subr.bf16.mxu0 0
        %1512 = vmatpush2.bf16.msra.mxu0 0
        %1513 = vmatprep.subr.bf16.mxu0 0
        %1514 = vmatpush2.bf16.msra.mxu0 0
        %1515 = vmatprep.subr.bf16.mxu0 0
        %1516 = vmatpush2.bf16.msra.mxu0 0
        %1517 = vmatprep.subr.bf16.mxu0 0
        %1518 = vmatpush2.bf16.msra.mxu0 0
        %1519 = vmatprep.subr.bf16.mxu0 0
        %1520 = vmatpush2.bf16.msra.mxu0 0
        %1521 = vmatprep.subr.bf16.mxu0 0
        %1522 = vmatpush2.bf16.msra.mxu0 0
        %1523 = vmatprep.subr.bf16.mxu0 0
        %1524 = vmatpush2.bf16.msra.mxu0 0
        %1525 = vmatprep.mubr.bf16.mxu0 0
        %1526 = vmatmul.mubr.bf16.gmra.mxu0 %v1450
        %v1527 = vpop.f32.mrf.mxu0
        %v1528 = vadd.f32 0.0, %v1527
        %v1529 = vpop.f32.mrf.mxu0
        %v1530 = vpop.f32.mrf.mxu0
        %v1531 = vpop.f32.mrf.mxu0
        %1532 = vdwg.mxu0
        %v1533 = vadd.f32 %v1421, %v1487
        %v1534 = vadd.f32 %v1422, %v1489
        %v1535 = vadd.f32 %v1423, %v1528
        %1536 = vst [vmem:[#allocation2] sm:$0xff] %v1533
        %1537 = vst [vmem:[#allocation2 + $0x8] sm:$0xff] %v1534
        %1538 = vst.msk [vmem:[#allocation2 + $0x10] sm:$0xff] %vm346, %v1535
        %v1539 = vld [vmem:[#allocation2] sm:$0xff]
        %v1540 = vld [vmem:[#allocation2 + $0x8] sm:$0xff]
        %v1541 = vld [vmem:[#allocation2 + $0x10] sm:$0xff]
        %v1542 = vld [vmem:[%s339] sm:$0xff]
        %1544 = vset.pattern.permute.xlu0 0
        %1545 = vperm.xlu0 %1544, %v1542
        %v1546 = vpop.permute.xlu0 %1545
        %v1548 = vadd.f32 %v1539, %v1546
        %v1549 = vadd.f32 %v1540, %v1546
        %v1550 = vadd.f32 %v1541, %v1546
        %1551 = vst [vmem:[%s331] sm:$0xff] %v1548
        %1552 = vst [vmem:[%s331 + $0x8] sm:$0xff] %v1549
        %1553 = vst.msk [vmem:[%s331 + $0x10] sm:$0xff] %vm346, %v1550
        %s1554 = sand.u32 %s184, 1
        %s1555 = scalar_lea.sflag [#allocation5], %s1554
        %s1556 = sand.u32 %s184, 1
        %s1557 = smul.addr %s1556, 24
        %s1558 = scalar_lea.vmem [#allocation9], %s1557
        // Predicated region
        $region53: #{tpu_custom_call.1} parent=39 // pred_check
          %p1559 = pneg %p194
        $region54: #{tpu_custom_call.1} parent=39 // pred_check_branch
          %1561 = sbr.rel (%p1559) target = $region56
        $region55: #{tpu_custom_call.1} parent=39 // pred_region
          %s1562 = smul.u32 3, %s30
          %s1564 = ssub.s32 384, 384
          %1565 = vsyncadd %s1555, %s1564
          %s1566 = smul.addr %s29, 3
          %s1567 = sadd.s32 %s1562, %s1566
          %s1568 = smul.addr %s28, 3
          %s1569 = sadd.s32 %s1567, %s1568
          %s1570 = smul.addr %s1569, 128
          %s1571 = scalar_lea.hbm %s5, %s1570
          %s1573 = sshll.u32 %s1558, 4
          %s1574 = int_to_ptr.vmem [resolvable:$true] %s1573
          %1576 = dma.vmem_to_hbm [thread:$0]  %s1574, 384, %s1571, %s1555
        $region56: #{tpu_custom_call.1} parent=39 // pred_fallthru
          _
      $region40: #{tpu_custom_call.1} parent=5 // pred_fallthru
        _
      %p1577 = scmp.le.s32.totalorder 2, %s18
      // Predicated region
      $region57: #{tpu_custom_call.1} parent=5 // pred_check
        %p1578 = pneg %p1577
      $region58: #{tpu_custom_call.1} parent=5 // pred_check_branch
        %1580 = sbr.rel (%p1578) target = $region60
      $region59: #{tpu_custom_call.1} parent=5 // pred_region
        %s1581 = ssub.s32 %s18, 2
        // Predicated region
        $region61: #{tpu_custom_call.1} parent=59 // pred_check
          %p1582 = pneg %p200
        $region62: #{tpu_custom_call.1} parent=59 // pred_check_branch
          %1584 = sbr.rel (%p1582) target = $region64
        $region63: #{tpu_custom_call.1} parent=59 // pred_region
          %s1585 = sand.u32 %s185, 1
          %s1586 = scalar_lea.sflag [#allocation5], %s1585
          %s1587 = sand.u32 %s185, 1
          %s1588 = smul.addr %s1587, 24
          %s1589 = scalar_lea.vmem [#allocation9], %s1588
          %1590 = dma.done %s1586, 384
        $region64: #{tpu_custom_call.1} parent=59 // pred_fallthru
          _
      $region60: #{tpu_custom_call.1} parent=5 // pred_fallthru
        _
    $region6: #{tpu_custom_call.1} parent=1 // loop_footer
      %s22 = sadd.s32 1, %s18
    $region7: #{tpu_custom_call.1} parent=1 // loop_footer_branch
      %17 = sbr.rel target = $region3
    $region8: #{tpu_custom_call.1} parent=1 // loop_exit
      _
    %1591 = vsyncpa [#allocation4], 1
    %s1592 = scalar_lea.sflag [#allocation4], 1
    %1593 = vsyncpa %s1592, 1
    %1594 = vsyncpa [#allocation7], 1
    %1595 = vsyncpa [#allocation5], 1
    %s1596 = scalar_lea.sflag [#allocation5], 1
    %1597 = vsyncpa %s1596, 1

</llo_original>
